<compile_context>
chip_gen: v5e
topology: v5e:2x2
jax: 0.10.0
libtpu: 0.0.40
codegen_flags: <defaults>
</compile_context>

<pallas_src>
import functools

import jax
import jax.numpy as jnp
from jax import lax
from jax.experimental import pallas as pl
from jax.experimental.pallas import tpu as pltpu


def _circ_shift_2d(x, shift, axis):
    """np.roll(x, shift, axis) on a 2-D tile via the XLU rotate (pltpu.roll).

    shift is a static Python int; it is normalized to [0, size) and the op is
    skipped entirely for the zero-shift (center) taps.
    """
    size = x.shape[axis]
    s = shift % size
    if s == 0:
        return x
    return pltpu.roll(x, s, axis)


def _equiv_conv_kernel(taps_ref, x_ref, o_ref, *, Bblk, C, H, W, K, n):
    """One block of Bblk batch elements per grid step.

    taps_ref: SMEM (B*K*K,) float32 -- per-batch-element kernel taps (flat).
    x_ref:    VMEM (Bblk, C, H, W)  -- input block, original dtype.
    o_ref:    VMEM (Bblk, C, H, W)  -- output block, original dtype.
    """
    step = pl.program_id(0)
    PL = (K - 1) // 2          # get_padding(): left = total_padding // 2 (odd K -> symmetric)

    for lb in range(Bblk):                                   # static small loop
        base = (step * Bblk + lb) * (K * K)
        # Hoist the K*K scalar tap reads (SMEM, scalar path) out of the channel loop.
        taps = [taps_ref[base + t] for t in range(K * K)]

        # TODO(synk): at production C, vectorize across channels (rank-3 rolls or
        # the MXU banded-circulant path) instead of this static per-channel loop.
        for c in range(C):
            cur0 = x_ref[lb, c].astype(jnp.float32)          # (H, W), f32 accumulate

            def repeat_body(_, cur):
                # out[h, w] = sum_{u,v} taps[u,v] * cur[(h+u-PL) % H, (w+v-PL) % W]
                acc = None
                for u in range(K):
                    # H-direction circular shift hoisted out of the v loop
                    ru = _circ_shift_2d(cur, PL - u, axis=0)
                    for v in range(K):
                        term = taps[u * K + v] * _circ_shift_2d(ru, PL - v, axis=1)
                        acc = term if acc is None else acc + term
                return acc

            out = lax.fori_loop(0, n, repeat_body, cur0, unroll=True)
            o_ref[lb, c] = out.astype(o_ref.dtype)           # cast only at the final store


def _choose_bblk(B, per_elem_block_bytes, budget_bytes=8 << 20):
    """Largest divisor of B whose double-buffered in+out blocks fit the budget,
    while keeping >= 2 grid steps when B >= 2 (so both v7x TensorCores get work)."""
    best = 1
    for d in range(1, B + 1):
        if B % d:
            continue
        if (B // d) < min(B, 2):
            continue
        if 4 * d * per_elem_block_bytes <= budget_bytes:     # 2 bufs x (in + out)
            best = d
    return best


def circular_depthwise_conv2d(x, taps, n=1):
    """Pallas implementation of the module's conv step, applied `n` times:

        x_pad = F.pad(x.transpose(0,1), get_padding((K,K)), mode='circular')
        y     = F.conv2d(x_pad, taps[:, None], groups=B).transpose(0,1)

    x: (B, C, H, W) any float dtype, taps: (B, K, K) -> (B, C, H, W) in x.dtype.
    """
    B, C, H, W = x.shape
    K = taps.shape[-1]

    per_elem_bytes = C * H * W * x.dtype.itemsize
    Bblk = _choose_bblk(B, per_elem_bytes)
    grid = (B // Bblk,)

    # 1-D SMEM layout avoids the [B, K^2] -> [ceil(B/8)*8, 128] SMEM padding.
    taps_flat = taps.reshape(B * K * K).astype(jnp.float32)

    kernel = functools.partial(_equiv_conv_kernel, Bblk=Bblk, C=C, H=H, W=W, K=K, n=n)

    # 2x double-buffered (in + out) blocks + slack; capped well under v7x's 64 MiB.
    vmem_limit = int(min(48 << 20, max(8 << 20, 4 * Bblk * per_elem_bytes + (1 << 20))))

    return pl.pallas_call(
        kernel,
        out_shape=jax.ShapeDtypeStruct((B, C, H, W), x.dtype),
        grid_spec=pltpu.PrefetchScalarGridSpec(
            num_scalar_prefetch=0,
            grid=grid,
            in_specs=[
                pl.BlockSpec(memory_space=pltpu.MemorySpace.SMEM),        # taps (whole, SMEM)
                pl.BlockSpec((Bblk, C, H, W), lambda i: (i, 0, 0, 0)),    # x block
            ],
            out_specs=pl.BlockSpec((Bblk, C, H, W), lambda i: (i, 0, 0, 0)),
        ),
        compiler_params=pltpu.CompilerParams(
            dimension_semantics=("parallel",),
            vmem_limit_bytes=vmem_limit,
        ),
    )(taps_flat, x)


def learned_equivariance_forward(params, x, g, l=0, n=1, *,
                                 handle_output_layer=True,
                                 first_layer_no_transform=False):
    """LearnedEquivariance.forward for 4-D NCHW input (vit_input=False).

    params: {"kernels": (group_size, K, K),
             "layer_transforms": list of (weight (out,in), bias (out,)) or None}
    x: (B, C, H, W), g: int32 (B,) group indices.  Returns (y, None).
    """
    if g is None:
        return 0
    kernels = params["kernels"]
    layer_transforms = params.get("layer_transforms")

    not_input = l > 0
    if first_layer_no_transform and not_input:
        l -= 1
    num_lt = len(layer_transforms) if layer_transforms is not None else 0
    last_layer = (layer_transforms is not None and l == num_lt
                  and handle_output_layer)

    # reshape_input(): a 4-D NCHW tensor passes through unchanged.
    # TODO(synk): flat (B, hidden) inputs (reshape_flat_to_chw) and the 5-D collapse
    # are not wired up here; the demo exercises the 4-D NCHW path.
    shape = x.shape
    B = shape[0]

    g = g % kernels.shape[0]
    taps = kernels[g]                                  # (B, K, K): one kernel / batch elem
    K = taps.shape[-1]

    if layer_transforms is not None and l > 0:
        w_l, b_l = layer_transforms[l - 1]             # nn.Linear: y = x @ W^T + b
        taps_flat = taps.reshape(B, K * K) @ w_l.T + b_l
        if last_layer:
            # TODO(synk): last-layer branch uses F.conv1d over the logit dimension with
            # circular padding; not implemented (demo only exercises the conv2d path).
            raise NotImplementedError("last-layer conv1d path not implemented")
        taps = taps_flat.reshape(B, K, K)

    # TODO(synk): vit_input=True token rearrange / cls-token handling not implemented.
    y = circular_depthwise_conv2d(x, taps, n=n)
    y = y.reshape(shape)
    return y, None


def reference_forward(params, x, g, l=0, n=1):
    """Pure-JAX reference: circular pad + per-batch depthwise cross-correlation."""
    kernels = params["kernels"]
    layer_transforms = params.get("layer_transforms")
    B, C, H, W = x.shape
    taps = kernels[g % kernels.shape[0]]
    K = taps.shape[-1]
    if layer_transforms is not None and l > 0:
        w_l, b_l = layer_transforms[l - 1]
        taps = (taps.reshape(B, K * K) @ w_l.T + b_l).reshape(B, K, K)
    PL = (K - 1) // 2
    PR = (K - 1) - PL
    out = x.astype(jnp.float32)
    for _ in range(n):
        xp = jnp.pad(out, ((0, 0), (0, 0), (PL, PR), (PL, PR)), mode="wrap")
        acc = jnp.zeros_like(out)
        for u in range(K):
            for v in range(K):
                acc = acc + xp[:, :, u:u + H, v:v + W] * taps[:, u, v][:, None, None, None]
        out = acc
    return out


if __name__ == "__main__":
    key = jax.random.PRNGKey(0)
    k_kern, k_lt, k_x = jax.random.split(key, 3)

    group_size, K = 8, 5
    B, C, H, W = 2, 4, 16, 16
    output_size, num_layers = 10, 3

    # Module parameters: per-group kernels + layer transforms
    # (num_layers-1 Linears of K^2 -> K^2 plus one K^2 -> output_size).
    kernels = jax.random.normal(k_kern, (group_size, K, K), jnp.float32)
    lt_keys = jax.random.split(k_lt, 2 * num_layers)
    layer_transforms = []
    for i in range(num_layers - 1):
        w_i = 0.3 * jax.random.normal(lt_keys[2 * i], (K * K, K * K), jnp.float32)
        b_i = 0.1 * jax.random.normal(lt_keys[2 * i + 1], (K * K,), jnp.float32)
        layer_transforms.append((w_i, b_i))
    w_out = 0.3 * jax.random.normal(lt_keys[-2], (output_size, K * K), jnp.float32)
    b_out = 0.1 * jax.random.normal(lt_keys[-1], (output_size,), jnp.float32)
    layer_transforms.append((w_out, b_out))

    params = {"kernels": kernels, "layer_transforms": layer_transforms}

    x = jax.random.normal(k_x, (B, C, H, W), jnp.float32)
    g = jnp.array([9, 3], dtype=jnp.int32)        # 9 % 8 == 1 exercises the modulo

    # Input layer (l=0), single application (n=1).
    out0, aux0 = learned_equivariance_forward(params, x, g, l=0, n=1)
    out0 = jax.block_until_ready(out0)
    ref0 = reference_forward(params, x, g, l=0, n=1)
    err0 = float(jnp.max(jnp.abs(out0 - ref0)))
    assert out0.shape == x.shape and aux0 is None
    assert out0.dtype == x.dtype
    assert jnp.allclose(out0, ref0, atol=1e-3, rtol=1e-3), f"max abs err {err0}"

    # Hidden layer (l=1 -> kernel passed through layer_transforms[0]), n=2 repeats.
    out1, _ = learned_equivariance_forward(params, x, g, l=1, n=2)
    out1 = jax.block_until_ready(out1)
    ref1 = reference_forward(params, x, g, l=1, n=2)
    err1 = float(jnp.max(jnp.abs(out1 - ref1)))
    assert jnp.allclose(out1, ref1, atol=1e-3, rtol=1e-3), f"max abs err {err1}"

    # bf16 activations: input dtype is preserved end-to-end (no wrapper cast);
    # the kernel accumulates in f32 and casts only at the final store.
    x_bf16 = x.astype(jnp.bfloat16)
    out2, _ = learned_equivariance_forward(params, x_bf16, g, l=0, n=1)
    out2 = jax.block_until_ready(out2)
    assert out2.dtype == jnp.bfloat16
    ref2 = reference_forward(params, x_bf16.astype(jnp.float32), g, l=0, n=1)
    err2 = float(jnp.max(jnp.abs(out2.astype(jnp.float32) - ref2)))
    assert jnp.allclose(out2.astype(jnp.float32), ref2, atol=0.1, rtol=0.05), \
        f"bf16 max abs err {err2}"

    print("KERNEL_OK")
</pallas_src>

<mosaic_0001>
module attributes {stable_mosaic.version = 11 : i64} {
  func.func @_equiv_conv_kernel(%arg0: i32, %arg1: memref<50xf32, #tpu.memory_space<smem>>, %arg2: memref<1x4x16x16xf32, #tpu.memory_space<vmem>>, %arg3: memref<1x4x16x16xf32, #tpu.memory_space<vmem>>) attributes {dimension_semantics = [#tpu.dimension_semantics<parallel>], iteration_bounds = array<i64: 2>, scalar_prefetch = 0 : i64, scratch_operands = 0 : i64, tpu.core_type = #tpu.core_type<tc>, window_params = [{transform_indices = @transform_0, window_bounds = array<i64: 50>}, {transform_indices = @transform_1, window_bounds = array<i64: 1, 4, 16, 16>}, {transform_indices = @transform_2, window_bounds = array<i64: 1, 4, 16, 16>}]} {
    %c1_i32 = arith.constant 1 : i32
    %0 = arith.muli %arg0, %c1_i32 : i32
    %c0_i32 = arith.constant 0 : i32
    %1 = arith.addi %0, %c0_i32 : i32
    %c25_i32 = arith.constant 25 : i32
    %2 = arith.muli %1, %c25_i32 : i32
    %c0_i32_0 = arith.constant 0 : i32
    %3 = arith.addi %2, %c0_i32_0 : i32
    %4 = arith.index_cast %3 : i32 to index
    %5 = memref.load %arg1[%4] : memref<50xf32, #tpu.memory_space<smem>>
    %c1_i32_1 = arith.constant 1 : i32
    %6 = arith.addi %2, %c1_i32_1 : i32
    %7 = arith.index_cast %6 : i32 to index
    %8 = memref.load %arg1[%7] : memref<50xf32, #tpu.memory_space<smem>>
    %c2_i32 = arith.constant 2 : i32
    %9 = arith.addi %2, %c2_i32 : i32
    %10 = arith.index_cast %9 : i32 to index
    %11 = memref.load %arg1[%10] : memref<50xf32, #tpu.memory_space<smem>>
    %c3_i32 = arith.constant 3 : i32
    %12 = arith.addi %2, %c3_i32 : i32
    %13 = arith.index_cast %12 : i32 to index
    %14 = memref.load %arg1[%13] : memref<50xf32, #tpu.memory_space<smem>>
    %c4_i32 = arith.constant 4 : i32
    %15 = arith.addi %2, %c4_i32 : i32
    %16 = arith.index_cast %15 : i32 to index
    %17 = memref.load %arg1[%16] : memref<50xf32, #tpu.memory_space<smem>>
    %c5_i32 = arith.constant 5 : i32
    %18 = arith.addi %2, %c5_i32 : i32
    %19 = arith.index_cast %18 : i32 to index
    %20 = memref.load %arg1[%19] : memref<50xf32, #tpu.memory_space<smem>>
    %c6_i32 = arith.constant 6 : i32
    %21 = arith.addi %2, %c6_i32 : i32
    %22 = arith.index_cast %21 : i32 to index
    %23 = memref.load %arg1[%22] : memref<50xf32, #tpu.memory_space<smem>>
    %c7_i32 = arith.constant 7 : i32
    %24 = arith.addi %2, %c7_i32 : i32
    %25 = arith.index_cast %24 : i32 to index
    %26 = memref.load %arg1[%25] : memref<50xf32, #tpu.memory_space<smem>>
    %c8_i32 = arith.constant 8 : i32
    %27 = arith.addi %2, %c8_i32 : i32
    %28 = arith.index_cast %27 : i32 to index
    %29 = memref.load %arg1[%28] : memref<50xf32, #tpu.memory_space<smem>>
    %c9_i32 = arith.constant 9 : i32
    %30 = arith.addi %2, %c9_i32 : i32
    %31 = arith.index_cast %30 : i32 to index
    %32 = memref.load %arg1[%31] : memref<50xf32, #tpu.memory_space<smem>>
    %c10_i32 = arith.constant 10 : i32
    %33 = arith.addi %2, %c10_i32 : i32
    %34 = arith.index_cast %33 : i32 to index
    %35 = memref.load %arg1[%34] : memref<50xf32, #tpu.memory_space<smem>>
    %c11_i32 = arith.constant 11 : i32
    %36 = arith.addi %2, %c11_i32 : i32
    %37 = arith.index_cast %36 : i32 to index
    %38 = memref.load %arg1[%37] : memref<50xf32, #tpu.memory_space<smem>>
    %c12_i32 = arith.constant 12 : i32
    %39 = arith.addi %2, %c12_i32 : i32
    %40 = arith.index_cast %39 : i32 to index
    %41 = memref.load %arg1[%40] : memref<50xf32, #tpu.memory_space<smem>>
    %c13_i32 = arith.constant 13 : i32
    %42 = arith.addi %2, %c13_i32 : i32
    %43 = arith.index_cast %42 : i32 to index
    %44 = memref.load %arg1[%43] : memref<50xf32, #tpu.memory_space<smem>>
    %c14_i32 = arith.constant 14 : i32
    %45 = arith.addi %2, %c14_i32 : i32
    %46 = arith.index_cast %45 : i32 to index
    %47 = memref.load %arg1[%46] : memref<50xf32, #tpu.memory_space<smem>>
    %c15_i32 = arith.constant 15 : i32
    %48 = arith.addi %2, %c15_i32 : i32
    %49 = arith.index_cast %48 : i32 to index
    %50 = memref.load %arg1[%49] : memref<50xf32, #tpu.memory_space<smem>>
    %c16_i32 = arith.constant 16 : i32
    %51 = arith.addi %2, %c16_i32 : i32
    %52 = arith.index_cast %51 : i32 to index
    %53 = memref.load %arg1[%52] : memref<50xf32, #tpu.memory_space<smem>>
    %c17_i32 = arith.constant 17 : i32
    %54 = arith.addi %2, %c17_i32 : i32
    %55 = arith.index_cast %54 : i32 to index
    %56 = memref.load %arg1[%55] : memref<50xf32, #tpu.memory_space<smem>>
    %c18_i32 = arith.constant 18 : i32
    %57 = arith.addi %2, %c18_i32 : i32
    %58 = arith.index_cast %57 : i32 to index
    %59 = memref.load %arg1[%58] : memref<50xf32, #tpu.memory_space<smem>>
    %c19_i32 = arith.constant 19 : i32
    %60 = arith.addi %2, %c19_i32 : i32
    %61 = arith.index_cast %60 : i32 to index
    %62 = memref.load %arg1[%61] : memref<50xf32, #tpu.memory_space<smem>>
    %c20_i32 = arith.constant 20 : i32
    %63 = arith.addi %2, %c20_i32 : i32
    %64 = arith.index_cast %63 : i32 to index
    %65 = memref.load %arg1[%64] : memref<50xf32, #tpu.memory_space<smem>>
    %c21_i32 = arith.constant 21 : i32
    %66 = arith.addi %2, %c21_i32 : i32
    %67 = arith.index_cast %66 : i32 to index
    %68 = memref.load %arg1[%67] : memref<50xf32, #tpu.memory_space<smem>>
    %c22_i32 = arith.constant 22 : i32
    %69 = arith.addi %2, %c22_i32 : i32
    %70 = arith.index_cast %69 : i32 to index
    %71 = memref.load %arg1[%70] : memref<50xf32, #tpu.memory_space<smem>>
    %c23_i32 = arith.constant 23 : i32
    %72 = arith.addi %2, %c23_i32 : i32
    %73 = arith.index_cast %72 : i32 to index
    %74 = memref.load %arg1[%73] : memref<50xf32, #tpu.memory_space<smem>>
    %c24_i32 = arith.constant 24 : i32
    %75 = arith.addi %2, %c24_i32 : i32
    %76 = arith.index_cast %75 : i32 to index
    %77 = memref.load %arg1[%76] : memref<50xf32, #tpu.memory_space<smem>>
    %c0 = arith.constant 0 : index
    %c0_2 = arith.constant 0 : index
    %c0_3 = arith.constant 0 : index
    %c0_4 = arith.constant 0 : index
    %78 = vector.load %arg2[%c0, %c0_2, %c0_3, %c0_4] : memref<1x4x16x16xf32, #tpu.memory_space<vmem>>, vector<1x1x16x16xf32>
    %79 = vector.shape_cast %78 : vector<1x1x16x16xf32> to vector<16x16xf32>
    %c0_i32_5 = arith.constant 0 : i32
    %c2_i32_6 = arith.constant 2 : i32
    %80 = tpu.dynamic_rotate %79 by %c2_i32_6 dim 0 : vector<16x16xf32>, i32 -> vector<16x16xf32>
    %c2_i32_7 = arith.constant 2 : i32
    %81 = tpu.dynamic_rotate %80 by %c2_i32_7 dim 1 : vector<16x16xf32>, i32 -> vector<16x16xf32>
    %82 = vector.broadcast %5 : f32 to vector<16x16xf32>
    %83 = arith.mulf %82, %81 : vector<16x16xf32>
    %c1_i32_8 = arith.constant 1 : i32
    %84 = tpu.dynamic_rotate %80 by %c1_i32_8 dim 1 : vector<16x16xf32>, i32 -> vector<16x16xf32>
    %85 = vector.broadcast %8 : f32 to vector<16x16xf32>
    %86 = arith.mulf %85, %84 : vector<16x16xf32>
    %87 = arith.addf %83, %86 : vector<16x16xf32>
    %88 = vector.broadcast %11 : f32 to vector<16x16xf32>
    %89 = arith.mulf %88, %80 : vector<16x16xf32>
    %90 = arith.addf %87, %89 : vector<16x16xf32>
    %c15_i32_9 = arith.constant 15 : i32
    %91 = tpu.dynamic_rotate %80 by %c15_i32_9 dim 1 : vector<16x16xf32>, i32 -> vector<16x16xf32>
    %92 = vector.broadcast %14 : f32 to vector<16x16xf32>
    %93 = arith.mulf %92, %91 : vector<16x16xf32>
    %94 = arith.addf %90, %93 : vector<16x16xf32>
    %c14_i32_10 = arith.constant 14 : i32
    %95 = tpu.dynamic_rotate %80 by %c14_i32_10 dim 1 : vector<16x16xf32>, i32 -> vector<16x16xf32>
    %96 = vector.broadcast %17 : f32 to vector<16x16xf32>
    %97 = arith.mulf %96, %95 : vector<16x16xf32>
    %98 = arith.addf %94, %97 : vector<16x16xf32>
    %c1_i32_11 = arith.constant 1 : i32
    %99 = tpu.dynamic_rotate %79 by %c1_i32_11 dim 0 : vector<16x16xf32>, i32 -> vector<16x16xf32>
    %c2_i32_12 = arith.constant 2 : i32
    %100 = tpu.dynamic_rotate %99 by %c2_i32_12 dim 1 : vector<16x16xf32>, i32 -> vector<16x16xf32>
    %101 = vector.broadcast %20 : f32 to vector<16x16xf32>
    %102 = arith.mulf %101, %100 : vector<16x16xf32>
    %103 = arith.addf %98, %102 : vector<16x16xf32>
    %c1_i32_13 = arith.constant 1 : i32
    %104 = tpu.dynamic_rotate %99 by %c1_i32_13 dim 1 : vector<16x16xf32>, i32 -> vector<16x16xf32>
    %105 = vector.broadcast %23 : f32 to vector<16x16xf32>
    %106 = arith.mulf %105, %104 : vector<16x16xf32>
    %107 = arith.addf %103, %106 : vector<16x16xf32>
    %108 = vector.broadcast %26 : f32 to vector<16x16xf32>
    %109 = arith.mulf %108, %99 : vector<16x16xf32>
    %110 = arith.addf %107, %109 : vector<16x16xf32>
    %c15_i32_14 = arith.constant 15 : i32
    %111 = tpu.dynamic_rotate %99 by %c15_i32_14 dim 1 : vector<16x16xf32>, i32 -> vector<16x16xf32>
    %112 = vector.broadcast %29 : f32 to vector<16x16xf32>
    %113 = arith.mulf %112, %111 : vector<16x16xf32>
    %114 = arith.addf %110, %113 : vector<16x16xf32>
    %c14_i32_15 = arith.constant 14 : i32
    %115 = tpu.dynamic_rotate %99 by %c14_i32_15 dim 1 : vector<16x16xf32>, i32 -> vector<16x16xf32>
    %116 = vector.broadcast %32 : f32 to vector<16x16xf32>
    %117 = arith.mulf %116, %115 : vector<16x16xf32>
    %118 = arith.addf %114, %117 : vector<16x16xf32>
    %c2_i32_16 = arith.constant 2 : i32
    %119 = tpu.dynamic_rotate %79 by %c2_i32_16 dim 1 : vector<16x16xf32>, i32 -> vector<16x16xf32>
    %120 = vector.broadcast %35 : f32 to vector<16x16xf32>
    %121 = arith.mulf %120, %119 : vector<16x16xf32>
    %122 = arith.addf %118, %121 : vector<16x16xf32>
    %c1_i32_17 = arith.constant 1 : i32
    %123 = tpu.dynamic_rotate %79 by %c1_i32_17 dim 1 : vector<16x16xf32>, i32 -> vector<16x16xf32>
    %124 = vector.broadcast %38 : f32 to vector<16x16xf32>
    %125 = arith.mulf %124, %123 : vector<16x16xf32>
    %126 = arith.addf %122, %125 : vector<16x16xf32>
    %127 = vector.broadcast %41 : f32 to vector<16x16xf32>
    %128 = arith.mulf %127, %79 : vector<16x16xf32>
    %129 = arith.addf %126, %128 : vector<16x16xf32>
    %c15_i32_18 = arith.constant 15 : i32
    %130 = tpu.dynamic_rotate %79 by %c15_i32_18 dim 1 : vector<16x16xf32>, i32 -> vector<16x16xf32>
    %131 = vector.broadcast %44 : f32 to vector<16x16xf32>
    %132 = arith.mulf %131, %130 : vector<16x16xf32>
    %133 = arith.addf %129, %132 : vector<16x16xf32>
    %c14_i32_19 = arith.constant 14 : i32
    %134 = tpu.dynamic_rotate %79 by %c14_i32_19 dim 1 : vector<16x16xf32>, i32 -> vector<16x16xf32>
    %135 = vector.broadcast %47 : f32 to vector<16x16xf32>
    %136 = arith.mulf %135, %134 : vector<16x16xf32>
    %137 = arith.addf %133, %136 : vector<16x16xf32>
    %c15_i32_20 = arith.constant 15 : i32
    %138 = tpu.dynamic_rotate %79 by %c15_i32_20 dim 0 : vector<16x16xf32>, i32 -> vector<16x16xf32>
    %c2_i32_21 = arith.constant 2 : i32
    %139 = tpu.dynamic_rotate %138 by %c2_i32_21 dim 1 : vector<16x16xf32>, i32 -> vector<16x16xf32>
    %140 = vector.broadcast %50 : f32 to vector<16x16xf32>
    %141 = arith.mulf %140, %139 : vector<16x16xf32>
    %142 = arith.addf %137, %141 : vector<16x16xf32>
    %c1_i32_22 = arith.constant 1 : i32
    %143 = tpu.dynamic_rotate %138 by %c1_i32_22 dim 1 : vector<16x16xf32>, i32 -> vector<16x16xf32>
    %144 = vector.broadcast %53 : f32 to vector<16x16xf32>
    %145 = arith.mulf %144, %143 : vector<16x16xf32>
    %146 = arith.addf %142, %145 : vector<16x16xf32>
    %147 = vector.broadcast %56 : f32 to vector<16x16xf32>
    %148 = arith.mulf %147, %138 : vector<16x16xf32>
    %149 = arith.addf %146, %148 : vector<16x16xf32>
    %c15_i32_23 = arith.constant 15 : i32
    %150 = tpu.dynamic_rotate %138 by %c15_i32_23 dim 1 : vector<16x16xf32>, i32 -> vector<16x16xf32>
    %151 = vector.broadcast %59 : f32 to vector<16x16xf32>
    %152 = arith.mulf %151, %150 : vector<16x16xf32>
    %153 = arith.addf %149, %152 : vector<16x16xf32>
    %c14_i32_24 = arith.constant 14 : i32
    %154 = tpu.dynamic_rotate %138 by %c14_i32_24 dim 1 : vector<16x16xf32>, i32 -> vector<16x16xf32>
    %155 = vector.broadcast %62 : f32 to vector<16x16xf32>
    %156 = arith.mulf %155, %154 : vector<16x16xf32>
    %157 = arith.addf %153, %156 : vector<16x16xf32>
    %c14_i32_25 = arith.constant 14 : i32
    %158 = tpu.dynamic_rotate %79 by %c14_i32_25 dim 0 : vector<16x16xf32>, i32 -> vector<16x16xf32>
    %c2_i32_26 = arith.constant 2 : i32
    %159 = tpu.dynamic_rotate %158 by %c2_i32_26 dim 1 : vector<16x16xf32>, i32 -> vector<16x16xf32>
    %160 = vector.broadcast %65 : f32 to vector<16x16xf32>
    %161 = arith.mulf %160, %159 : vector<16x16xf32>
    %162 = arith.addf %157, %161 : vector<16x16xf32>
    %c1_i32_27 = arith.constant 1 : i32
    %163 = tpu.dynamic_rotate %158 by %c1_i32_27 dim 1 : vector<16x16xf32>, i32 -> vector<16x16xf32>
    %164 = vector.broadcast %68 : f32 to vector<16x16xf32>
    %165 = arith.mulf %164, %163 : vector<16x16xf32>
    %166 = arith.addf %162, %165 : vector<16x16xf32>
    %167 = vector.broadcast %71 : f32 to vector<16x16xf32>
    %168 = arith.mulf %167, %158 : vector<16x16xf32>
    %169 = arith.addf %166, %168 : vector<16x16xf32>
    %c15_i32_28 = arith.constant 15 : i32
    %170 = tpu.dynamic_rotate %158 by %c15_i32_28 dim 1 : vector<16x16xf32>, i32 -> vector<16x16xf32>
    %171 = vector.broadcast %74 : f32 to vector<16x16xf32>
    %172 = arith.mulf %171, %170 : vector<16x16xf32>
    %173 = arith.addf %169, %172 : vector<16x16xf32>
    %c14_i32_29 = arith.constant 14 : i32
    %174 = tpu.dynamic_rotate %158 by %c14_i32_29 dim 1 : vector<16x16xf32>, i32 -> vector<16x16xf32>
    %175 = vector.broadcast %77 : f32 to vector<16x16xf32>
    %176 = arith.mulf %175, %174 : vector<16x16xf32>
    %177 = arith.addf %173, %176 : vector<16x16xf32>
    %c0_30 = arith.constant 0 : index
    %c0_31 = arith.constant 0 : index
    %c0_32 = arith.constant 0 : index
    %c0_33 = arith.constant 0 : index
    %178 = vector.load %arg3[%c0_30, %c0_31, %c0_32, %c0_33] : memref<1x4x16x16xf32, #tpu.memory_space<vmem>>, vector<1x1x16x16xf32>
    %179 = vector.shape_cast %178 : vector<1x1x16x16xf32> to vector<16x16xf32>
    %180 = vector.shape_cast %177 : vector<16x16xf32> to vector<1x1x16x16xf32>
    tpu.vector_store %arg3[%c0_30, %c0_31, %c0_32, %c0_33], %180 {strides = array<i32>} : memref<1x4x16x16xf32, #tpu.memory_space<vmem>>, vector<1x1x16x16xf32>,
    %c0_34 = arith.constant 0 : index
    %c1 = arith.constant 1 : index
    %c0_35 = arith.constant 0 : index
    %c0_36 = arith.constant 0 : index
    %181 = vector.load %arg2[%c0_34, %c1, %c0_35, %c0_36] : memref<1x4x16x16xf32, #tpu.memory_space<vmem>>, vector<1x1x16x16xf32>
    %182 = vector.shape_cast %181 : vector<1x1x16x16xf32> to vector<16x16xf32>
    %c0_i32_37 = arith.constant 0 : i32
    %c2_i32_38 = arith.constant 2 : i32
    %183 = tpu.dynamic_rotate %182 by %c2_i32_38 dim 0 : vector<16x16xf32>, i32 -> vector<16x16xf32>
    %c2_i32_39 = arith.constant 2 : i32
    %184 = tpu.dynamic_rotate %183 by %c2_i32_39 dim 1 : vector<16x16xf32>, i32 -> vector<16x16xf32>
    %185 = vector.broadcast %5 : f32 to vector<16x16xf32>
    %186 = arith.mulf %185, %184 : vector<16x16xf32>
    %c1_i32_40 = arith.constant 1 : i32
    %187 = tpu.dynamic_rotate %183 by %c1_i32_40 dim 1 : vector<16x16xf32>, i32 -> vector<16x16xf32>
    %188 = vector.broadcast %8 : f32 to vector<16x16xf32>
    %189 = arith.mulf %188, %187 : vector<16x16xf32>
    %190 = arith.addf %186, %189 : vector<16x16xf32>
    %191 = vector.broadcast %11 : f32 to vector<16x16xf32>
    %192 = arith.mulf %191, %183 : vector<16x16xf32>
    %193 = arith.addf %190, %192 : vector<16x16xf32>
    %c15_i32_41 = arith.constant 15 : i32
    %194 = tpu.dynamic_rotate %183 by %c15_i32_41 dim 1 : vector<16x16xf32>, i32 -> vector<16x16xf32>
    %195 = vector.broadcast %14 : f32 to vector<16x16xf32>
    %196 = arith.mulf %195, %194 : vector<16x16xf32>
    %197 = arith.addf %193, %196 : vector<16x16xf32>
    %c14_i32_42 = arith.constant 14 : i32
    %198 = tpu.dynamic_rotate %183 by %c14_i32_42 dim 1 : vector<16x16xf32>, i32 -> vector<16x16xf32>
    %199 = vector.broadcast %17 : f32 to vector<16x16xf32>
    %200 = arith.mulf %199, %198 : vector<16x16xf32>
    %201 = arith.addf %197, %200 : vector<16x16xf32>
    %c1_i32_43 = arith.constant 1 : i32
    %202 = tpu.dynamic_rotate %182 by %c1_i32_43 dim 0 : vector<16x16xf32>, i32 -> vector<16x16xf32>
    %c2_i32_44 = arith.constant 2 : i32
    %203 = tpu.dynamic_rotate %202 by %c2_i32_44 dim 1 : vector<16x16xf32>, i32 -> vector<16x16xf32>
    %204 = vector.broadcast %20 : f32 to vector<16x16xf32>
    %205 = arith.mulf %204, %203 : vector<16x16xf32>
    %206 = arith.addf %201, %205 : vector<16x16xf32>
    %c1_i32_45 = arith.constant 1 : i32
    %207 = tpu.dynamic_rotate %202 by %c1_i32_45 dim 1 : vector<16x16xf32>, i32 -> vector<16x16xf32>
    %208 = vector.broadcast %23 : f32 to vector<16x16xf32>
    %209 = arith.mulf %208, %207 : vector<16x16xf32>
    %210 = arith.addf %206, %209 : vector<16x16xf32>
    %211 = vector.broadcast %26 : f32 to vector<16x16xf32>
    %212 = arith.mulf %211, %202 : vector<16x16xf32>
    %213 = arith.addf %210, %212 : vector<16x16xf32>
    %c15_i32_46 = arith.constant 15 : i32
    %214 = tpu.dynamic_rotate %202 by %c15_i32_46 dim 1 : vector<16x16xf32>, i32 -> vector<16x16xf32>
    %215 = vector.broadcast %29 : f32 to vector<16x16xf32>
    %216 = arith.mulf %215, %214 : vector<16x16xf32>
    %217 = arith.addf %213, %216 : vector<16x16xf32>
    %c14_i32_47 = arith.constant 14 : i32
    %218 = tpu.dynamic_rotate %202 by %c14_i32_47 dim 1 : vector<16x16xf32>, i32 -> vector<16x16xf32>
    %219 = vector.broadcast %32 : f32 to vector<16x16xf32>
    %220 = arith.mulf %219, %218 : vector<16x16xf32>
    %221 = arith.addf %217, %220 : vector<16x16xf32>
    %c2_i32_48 = arith.constant 2 : i32
    %222 = tpu.dynamic_rotate %182 by %c2_i32_48 dim 1 : vector<16x16xf32>, i32 -> vector<16x16xf32>
    %223 = vector.broadcast %35 : f32 to vector<16x16xf32>
    %224 = arith.mulf %223, %222 : vector<16x16xf32>
    %225 = arith.addf %221, %224 : vector<16x16xf32>
    %c1_i32_49 = arith.constant 1 : i32
    %226 = tpu.dynamic_rotate %182 by %c1_i32_49 dim 1 : vector<16x16xf32>, i32 -> vector<16x16xf32>
    %227 = vector.broadcast %38 : f32 to vector<16x16xf32>
    %228 = arith.mulf %227, %226 : vector<16x16xf32>
    %229 = arith.addf %225, %228 : vector<16x16xf32>
    %230 = vector.broadcast %41 : f32 to vector<16x16xf32>
    %231 = arith.mulf %230, %182 : vector<16x16xf32>
    %232 = arith.addf %229, %231 : vector<16x16xf32>
    %c15_i32_50 = arith.constant 15 : i32
    %233 = tpu.dynamic_rotate %182 by %c15_i32_50 dim 1 : vector<16x16xf32>, i32 -> vector<16x16xf32>
    %234 = vector.broadcast %44 : f32 to vector<16x16xf32>
    %235 = arith.mulf %234, %233 : vector<16x16xf32>
    %236 = arith.addf %232, %235 : vector<16x16xf32>
    %c14_i32_51 = arith.constant 14 : i32
    %237 = tpu.dynamic_rotate %182 by %c14_i32_51 dim 1 : vector<16x16xf32>, i32 -> vector<16x16xf32>
    %238 = vector.broadcast %47 : f32 to vector<16x16xf32>
    %239 = arith.mulf %238, %237 : vector<16x16xf32>
    %240 = arith.addf %236, %239 : vector<16x16xf32>
    %c15_i32_52 = arith.constant 15 : i32
    %241 = tpu.dynamic_rotate %182 by %c15_i32_52 dim 0 : vector<16x16xf32>, i32 -> vector<16x16xf32>
    %c2_i32_53 = arith.constant 2 : i32
    %242 = tpu.dynamic_rotate %241 by %c2_i32_53 dim 1 : vector<16x16xf32>, i32 -> vector<16x16xf32>
    %243 = vector.broadcast %50 : f32 to vector<16x16xf32>
    %244 = arith.mulf %243, %242 : vector<16x16xf32>
    %245 = arith.addf %240, %244 : vector<16x16xf32>
    %c1_i32_54 = arith.constant 1 : i32
    %246 = tpu.dynamic_rotate %241 by %c1_i32_54 dim 1 : vector<16x16xf32>, i32 -> vector<16x16xf32>
    %247 = vector.broadcast %53 : f32 to vector<16x16xf32>
    %248 = arith.mulf %247, %246 : vector<16x16xf32>
    %249 = arith.addf %245, %248 : vector<16x16xf32>
    %250 = vector.broadcast %56 : f32 to vector<16x16xf32>
    %251 = arith.mulf %250, %241 : vector<16x16xf32>
    %252 = arith.addf %249, %251 : vector<16x16xf32>
    %c15_i32_55 = arith.constant 15 : i32
    %253 = tpu.dynamic_rotate %241 by %c15_i32_55 dim 1 : vector<16x16xf32>, i32 -> vector<16x16xf32>
    %254 = vector.broadcast %59 : f32 to vector<16x16xf32>
    %255 = arith.mulf %254, %253 : vector<16x16xf32>
    %256 = arith.addf %252, %255 : vector<16x16xf32>
    %c14_i32_56 = arith.constant 14 : i32
    %257 = tpu.dynamic_rotate %241 by %c14_i32_56 dim 1 : vector<16x16xf32>, i32 -> vector<16x16xf32>
    %258 = vector.broadcast %62 : f32 to vector<16x16xf32>
    %259 = arith.mulf %258, %257 : vector<16x16xf32>
    %260 = arith.addf %256, %259 : vector<16x16xf32>
    %c14_i32_57 = arith.constant 14 : i32
    %261 = tpu.dynamic_rotate %182 by %c14_i32_57 dim 0 : vector<16x16xf32>, i32 -> vector<16x16xf32>
    %c2_i32_58 = arith.constant 2 : i32
    %262 = tpu.dynamic_rotate %261 by %c2_i32_58 dim 1 : vector<16x16xf32>, i32 -> vector<16x16xf32>
    %263 = vector.broadcast %65 : f32 to vector<16x16xf32>
    %264 = arith.mulf %263, %262 : vector<16x16xf32>
    %265 = arith.addf %260, %264 : vector<16x16xf32>
    %c1_i32_59 = arith.constant 1 : i32
    %266 = tpu.dynamic_rotate %261 by %c1_i32_59 dim 1 : vector<16x16xf32>, i32 -> vector<16x16xf32>
    %267 = vector.broadcast %68 : f32 to vector<16x16xf32>
    %268 = arith.mulf %267, %266 : vector<16x16xf32>
    %269 = arith.addf %265, %268 : vector<16x16xf32>
    %270 = vector.broadcast %71 : f32 to vector<16x16xf32>
    %271 = arith.mulf %270, %261 : vector<16x16xf32>
    %272 = arith.addf %269, %271 : vector<16x16xf32>
    %c15_i32_60 = arith.constant 15 : i32
    %273 = tpu.dynamic_rotate %261 by %c15_i32_60 dim 1 : vector<16x16xf32>, i32 -> vector<16x16xf32>
    %274 = vector.broadcast %74 : f32 to vector<16x16xf32>
    %275 = arith.mulf %274, %273 : vector<16x16xf32>
    %276 = arith.addf %272, %275 : vector<16x16xf32>
    %c14_i32_61 = arith.constant 14 : i32
    %277 = tpu.dynamic_rotate %261 by %c14_i32_61 dim 1 : vector<16x16xf32>, i32 -> vector<16x16xf32>
    %278 = vector.broadcast %77 : f32 to vector<16x16xf32>
    %279 = arith.mulf %278, %277 : vector<16x16xf32>
    %280 = arith.addf %276, %279 : vector<16x16xf32>
    %c0_62 = arith.constant 0 : index
    %c1_63 = arith.constant 1 : index
    %c0_64 = arith.constant 0 : index
    %c0_65 = arith.constant 0 : index
    %281 = vector.load %arg3[%c0_62, %c1_63, %c0_64, %c0_65] : memref<1x4x16x16xf32, #tpu.memory_space<vmem>>, vector<1x1x16x16xf32>
    %282 = vector.shape_cast %281 : vector<1x1x16x16xf32> to vector<16x16xf32>
    %283 = vector.shape_cast %280 : vector<16x16xf32> to vector<1x1x16x16xf32>
    tpu.vector_store %arg3[%c0_62, %c1_63, %c0_64, %c0_65], %283 {strides = array<i32>} : memref<1x4x16x16xf32, #tpu.memory_space<vmem>>, vector<1x1x16x16xf32>,
    %c0_66 = arith.constant 0 : index
    %c2 = arith.constant 2 : index
    %c0_67 = arith.constant 0 : index
    %c0_68 = arith.constant 0 : index
    %284 = vector.load %arg2[%c0_66, %c2, %c0_67, %c0_68] : memref<1x4x16x16xf32, #tpu.memory_space<vmem>>, vector<1x1x16x16xf32>
    %285 = vector.shape_cast %284 : vector<1x1x16x16xf32> to vector<16x16xf32>
    %c0_i32_69 = arith.constant 0 : i32
    %c2_i32_70 = arith.constant 2 : i32
    %286 = tpu.dynamic_rotate %285 by %c2_i32_70 dim 0 : vector<16x16xf32>, i32 -> vector<16x16xf32>
    %c2_i32_71 = arith.constant 2 : i32
    %287 = tpu.dynamic_rotate %286 by %c2_i32_71 dim 1 : vector<16x16xf32>, i32 -> vector<16x16xf32>
    %288 = vector.broadcast %5 : f32 to vector<16x16xf32>
    %289 = arith.mulf %288, %287 : vector<16x16xf32>
    %c1_i32_72 = arith.constant 1 : i32
    %290 = tpu.dynamic_rotate %286 by %c1_i32_72 dim 1 : vector<16x16xf32>, i32 -> vector<16x16xf32>
    %291 = vector.broadcast %8 : f32 to vector<16x16xf32>
    %292 = arith.mulf %291, %290 : vector<16x16xf32>
    %293 = arith.addf %289, %292 : vector<16x16xf32>
    %294 = vector.broadcast %11 : f32 to vector<16x16xf32>
    %295 = arith.mulf %294, %286 : vector<16x16xf32>
    %296 = arith.addf %293, %295 : vector<16x16xf32>
    %c15_i32_73 = arith.constant 15 : i32
    %297 = tpu.dynamic_rotate %286 by %c15_i32_73 dim 1 : vector<16x16xf32>, i32 -> vector<16x16xf32>
    %298 = vector.broadcast %14 : f32 to vector<16x16xf32>
    %299 = arith.mulf %298, %297 : vector<16x16xf32>
    %300 = arith.addf %296, %299 : vector<16x16xf32>
    %c14_i32_74 = arith.constant 14 : i32
    %301 = tpu.dynamic_rotate %286 by %c14_i32_74 dim 1 : vector<16x16xf32>, i32 -> vector<16x16xf32>
    %302 = vector.broadcast %17 : f32 to vector<16x16xf32>
    %303 = arith.mulf %302, %301 : vector<16x16xf32>
    %304 = arith.addf %300, %303 : vector<16x16xf32>
    %c1_i32_75 = arith.constant 1 : i32
    %305 = tpu.dynamic_rotate %285 by %c1_i32_75 dim 0 : vector<16x16xf32>, i32 -> vector<16x16xf32>
    %c2_i32_76 = arith.constant 2 : i32
    %306 = tpu.dynamic_rotate %305 by %c2_i32_76 dim 1 : vector<16x16xf32>, i32 -> vector<16x16xf32>
    %307 = vector.broadcast %20 : f32 to vector<16x16xf32>
    %308 = arith.mulf %307, %306 : vector<16x16xf32>
    %309 = arith.addf %304, %308 : vector<16x16xf32>
    %c1_i32_77 = arith.constant 1 : i32
    %310 = tpu.dynamic_rotate %305 by %c1_i32_77 dim 1 : vector<16x16xf32>, i32 -> vector<16x16xf32>
    %311 = vector.broadcast %23 : f32 to vector<16x16xf32>
    %312 = arith.mulf %311, %310 : vector<16x16xf32>
    %313 = arith.addf %309, %312 : vector<16x16xf32>
    %314 = vector.broadcast %26 : f32 to vector<16x16xf32>
    %315 = arith.mulf %314, %305 : vector<16x16xf32>
    %316 = arith.addf %313, %315 : vector<16x16xf32>
    %c15_i32_78 = arith.constant 15 : i32
    %317 = tpu.dynamic_rotate %305 by %c15_i32_78 dim 1 : vector<16x16xf32>, i32 -> vector<16x16xf32>
    %318 = vector.broadcast %29 : f32 to vector<16x16xf32>
    %319 = arith.mulf %318, %317 : vector<16x16xf32>
    %320 = arith.addf %316, %319 : vector<16x16xf32>
    %c14_i32_79 = arith.constant 14 : i32
    %321 = tpu.dynamic_rotate %305 by %c14_i32_79 dim 1 : vector<16x16xf32>, i32 -> vector<16x16xf32>
    %322 = vector.broadcast %32 : f32 to vector<16x16xf32>
    %323 = arith.mulf %322, %321 : vector<16x16xf32>
    %324 = arith.addf %320, %323 : vector<16x16xf32>
    %c2_i32_80 = arith.constant 2 : i32
    %325 = tpu.dynamic_rotate %285 by %c2_i32_80 dim 1 : vector<16x16xf32>, i32 -> vector<16x16xf32>
    %326 = vector.broadcast %35 : f32 to vector<16x16xf32>
    %327 = arith.mulf %326, %325 : vector<16x16xf32>
    %328 = arith.addf %324, %327 : vector<16x16xf32>
    %c1_i32_81 = arith.constant 1 : i32
    %329 = tpu.dynamic_rotate %285 by %c1_i32_81 dim 1 : vector<16x16xf32>, i32 -> vector<16x16xf32>
    %330 = vector.broadcast %38 : f32 to vector<16x16xf32>
    %331 = arith.mulf %330, %329 : vector<16x16xf32>
    %332 = arith.addf %328, %331 : vector<16x16xf32>
    %333 = vector.broadcast %41 : f32 to vector<16x16xf32>
    %334 = arith.mulf %333, %285 : vector<16x16xf32>
    %335 = arith.addf %332, %334 : vector<16x16xf32>
    %c15_i32_82 = arith.constant 15 : i32
    %336 = tpu.dynamic_rotate %285 by %c15_i32_82 dim 1 : vector<16x16xf32>, i32 -> vector<16x16xf32>
    %337 = vector.broadcast %44 : f32 to vector<16x16xf32>
    %338 = arith.mulf %337, %336 : vector<16x16xf32>
    %339 = arith.addf %335, %338 : vector<16x16xf32>
    %c14_i32_83 = arith.constant 14 : i32
    %340 = tpu.dynamic_rotate %285 by %c14_i32_83 dim 1 : vector<16x16xf32>, i32 -> vector<16x16xf32>
    %341 = vector.broadcast %47 : f32 to vector<16x16xf32>
    %342 = arith.mulf %341, %340 : vector<16x16xf32>
    %343 = arith.addf %339, %342 : vector<16x16xf32>
    %c15_i32_84 = arith.constant 15 : i32
    %344 = tpu.dynamic_rotate %285 by %c15_i32_84 dim 0 : vector<16x16xf32>, i32 -> vector<16x16xf32>
    %c2_i32_85 = arith.constant 2 : i32
    %345 = tpu.dynamic_rotate %344 by %c2_i32_85 dim 1 : vector<16x16xf32>, i32 -> vector<16x16xf32>
    %346 = vector.broadcast %50 : f32 to vector<16x16xf32>
    %347 = arith.mulf %346, %345 : vector<16x16xf32>
    %348 = arith.addf %343, %347 : vector<16x16xf32>
    %c1_i32_86 = arith.constant 1 : i32
    %349 = tpu.dynamic_rotate %344 by %c1_i32_86 dim 1 : vector<16x16xf32>, i32 -> vector<16x16xf32>
    %350 = vector.broadcast %53 : f32 to vector<16x16xf32>
    %351 = arith.mulf %350, %349 : vector<16x16xf32>
    %352 = arith.addf %348, %351 : vector<16x16xf32>
    %353 = vector.broadcast %56 : f32 to vector<16x16xf32>
    %354 = arith.mulf %353, %344 : vector<16x16xf32>
    %355 = arith.addf %352, %354 : vector<16x16xf32>
    %c15_i32_87 = arith.constant 15 : i32
    %356 = tpu.dynamic_rotate %344 by %c15_i32_87 dim 1 : vector<16x16xf32>, i32 -> vector<16x16xf32>
    %357 = vector.broadcast %59 : f32 to vector<16x16xf32>
    %358 = arith.mulf %357, %356 : vector<16x16xf32>
    %359 = arith.addf %355, %358 : vector<16x16xf32>
    %c14_i32_88 = arith.constant 14 : i32
    %360 = tpu.dynamic_rotate %344 by %c14_i32_88 dim 1 : vector<16x16xf32>, i32 -> vector<16x16xf32>
    %361 = vector.broadcast %62 : f32 to vector<16x16xf32>
    %362 = arith.mulf %361, %360 : vector<16x16xf32>
    %363 = arith.addf %359, %362 : vector<16x16xf32>
    %c14_i32_89 = arith.constant 14 : i32
    %364 = tpu.dynamic_rotate %285 by %c14_i32_89 dim 0 : vector<16x16xf32>, i32 -> vector<16x16xf32>
    %c2_i32_90 = arith.constant 2 : i32
    %365 = tpu.dynamic_rotate %364 by %c2_i32_90 dim 1 : vector<16x16xf32>, i32 -> vector<16x16xf32>
    %366 = vector.broadcast %65 : f32 to vector<16x16xf32>
    %367 = arith.mulf %366, %365 : vector<16x16xf32>
    %368 = arith.addf %363, %367 : vector<16x16xf32>
    %c1_i32_91 = arith.constant 1 : i32
    %369 = tpu.dynamic_rotate %364 by %c1_i32_91 dim 1 : vector<16x16xf32>, i32 -> vector<16x16xf32>
    %370 = vector.broadcast %68 : f32 to vector<16x16xf32>
    %371 = arith.mulf %370, %369 : vector<16x16xf32>
    %372 = arith.addf %368, %371 : vector<16x16xf32>
    %373 = vector.broadcast %71 : f32 to vector<16x16xf32>
    %374 = arith.mulf %373, %364 : vector<16x16xf32>
    %375 = arith.addf %372, %374 : vector<16x16xf32>
    %c15_i32_92 = arith.constant 15 : i32
    %376 = tpu.dynamic_rotate %364 by %c15_i32_92 dim 1 : vector<16x16xf32>, i32 -> vector<16x16xf32>
    %377 = vector.broadcast %74 : f32 to vector<16x16xf32>
    %378 = arith.mulf %377, %376 : vector<16x16xf32>
    %379 = arith.addf %375, %378 : vector<16x16xf32>
    %c14_i32_93 = arith.constant 14 : i32
    %380 = tpu.dynamic_rotate %364 by %c14_i32_93 dim 1 : vector<16x16xf32>, i32 -> vector<16x16xf32>
    %381 = vector.broadcast %77 : f32 to vector<16x16xf32>
    %382 = arith.mulf %381, %380 : vector<16x16xf32>
    %383 = arith.addf %379, %382 : vector<16x16xf32>
    %c0_94 = arith.constant 0 : index
    %c2_95 = arith.constant 2 : index
    %c0_96 = arith.constant 0 : index
    %c0_97 = arith.constant 0 : index
    %384 = vector.load %arg3[%c0_94, %c2_95, %c0_96, %c0_97] : memref<1x4x16x16xf32, #tpu.memory_space<vmem>>, vector<1x1x16x16xf32>
    %385 = vector.shape_cast %384 : vector<1x1x16x16xf32> to vector<16x16xf32>
    %386 = vector.shape_cast %383 : vector<16x16xf32> to vector<1x1x16x16xf32>
    tpu.vector_store %arg3[%c0_94, %c2_95, %c0_96, %c0_97], %386 {strides = array<i32>} : memref<1x4x16x16xf32, #tpu.memory_space<vmem>>, vector<1x1x16x16xf32>,
    %c0_98 = arith.constant 0 : index
    %c3 = arith.constant 3 : index
    %c0_99 = arith.constant 0 : index
    %c0_100 = arith.constant 0 : index
    %387 = vector.load %arg2[%c0_98, %c3, %c0_99, %c0_100] : memref<1x4x16x16xf32, #tpu.memory_space<vmem>>, vector<1x1x16x16xf32>
    %388 = vector.shape_cast %387 : vector<1x1x16x16xf32> to vector<16x16xf32>
    %c0_i32_101 = arith.constant 0 : i32
    %c2_i32_102 = arith.constant 2 : i32
    %389 = tpu.dynamic_rotate %388 by %c2_i32_102 dim 0 : vector<16x16xf32>, i32 -> vector<16x16xf32>
    %c2_i32_103 = arith.constant 2 : i32
    %390 = tpu.dynamic_rotate %389 by %c2_i32_103 dim 1 : vector<16x16xf32>, i32 -> vector<16x16xf32>
    %391 = vector.broadcast %5 : f32 to vector<16x16xf32>
    %392 = arith.mulf %391, %390 : vector<16x16xf32>
    %c1_i32_104 = arith.constant 1 : i32
    %393 = tpu.dynamic_rotate %389 by %c1_i32_104 dim 1 : vector<16x16xf32>, i32 -> vector<16x16xf32>
    %394 = vector.broadcast %8 : f32 to vector<16x16xf32>
    %395 = arith.mulf %394, %393 : vector<16x16xf32>
    %396 = arith.addf %392, %395 : vector<16x16xf32>
    %397 = vector.broadcast %11 : f32 to vector<16x16xf32>
    %398 = arith.mulf %397, %389 : vector<16x16xf32>
    %399 = arith.addf %396, %398 : vector<16x16xf32>
    %c15_i32_105 = arith.constant 15 : i32
    %400 = tpu.dynamic_rotate %389 by %c15_i32_105 dim 1 : vector<16x16xf32>, i32 -> vector<16x16xf32>
    %401 = vector.broadcast %14 : f32 to vector<16x16xf32>
    %402 = arith.mulf %401, %400 : vector<16x16xf32>
    %403 = arith.addf %399, %402 : vector<16x16xf32>
    %c14_i32_106 = arith.constant 14 : i32
    %404 = tpu.dynamic_rotate %389 by %c14_i32_106 dim 1 : vector<16x16xf32>, i32 -> vector<16x16xf32>
    %405 = vector.broadcast %17 : f32 to vector<16x16xf32>
    %406 = arith.mulf %405, %404 : vector<16x16xf32>
    %407 = arith.addf %403, %406 : vector<16x16xf32>
    %c1_i32_107 = arith.constant 1 : i32
    %408 = tpu.dynamic_rotate %388 by %c1_i32_107 dim 0 : vector<16x16xf32>, i32 -> vector<16x16xf32>
    %c2_i32_108 = arith.constant 2 : i32
    %409 = tpu.dynamic_rotate %408 by %c2_i32_108 dim 1 : vector<16x16xf32>, i32 -> vector<16x16xf32>
    %410 = vector.broadcast %20 : f32 to vector<16x16xf32>
    %411 = arith.mulf %410, %409 : vector<16x16xf32>
    %412 = arith.addf %407, %411 : vector<16x16xf32>
    %c1_i32_109 = arith.constant 1 : i32
    %413 = tpu.dynamic_rotate %408 by %c1_i32_109 dim 1 : vector<16x16xf32>, i32 -> vector<16x16xf32>
    %414 = vector.broadcast %23 : f32 to vector<16x16xf32>
    %415 = arith.mulf %414, %413 : vector<16x16xf32>
    %416 = arith.addf %412, %415 : vector<16x16xf32>
    %417 = vector.broadcast %26 : f32 to vector<16x16xf32>
    %418 = arith.mulf %417, %408 : vector<16x16xf32>
    %419 = arith.addf %416, %418 : vector<16x16xf32>
    %c15_i32_110 = arith.constant 15 : i32
    %420 = tpu.dynamic_rotate %408 by %c15_i32_110 dim 1 : vector<16x16xf32>, i32 -> vector<16x16xf32>
    %421 = vector.broadcast %29 : f32 to vector<16x16xf32>
    %422 = arith.mulf %421, %420 : vector<16x16xf32>
    %423 = arith.addf %419, %422 : vector<16x16xf32>
    %c14_i32_111 = arith.constant 14 : i32
    %424 = tpu.dynamic_rotate %408 by %c14_i32_111 dim 1 : vector<16x16xf32>, i32 -> vector<16x16xf32>
    %425 = vector.broadcast %32 : f32 to vector<16x16xf32>
    %426 = arith.mulf %425, %424 : vector<16x16xf32>
    %427 = arith.addf %423, %426 : vector<16x16xf32>
    %c2_i32_112 = arith.constant 2 : i32
    %428 = tpu.dynamic_rotate %388 by %c2_i32_112 dim 1 : vector<16x16xf32>, i32 -> vector<16x16xf32>
    %429 = vector.broadcast %35 : f32 to vector<16x16xf32>
    %430 = arith.mulf %429, %428 : vector<16x16xf32>
    %431 = arith.addf %427, %430 : vector<16x16xf32>
    %c1_i32_113 = arith.constant 1 : i32
    %432 = tpu.dynamic_rotate %388 by %c1_i32_113 dim 1 : vector<16x16xf32>, i32 -> vector<16x16xf32>
    %433 = vector.broadcast %38 : f32 to vector<16x16xf32>
    %434 = arith.mulf %433, %432 : vector<16x16xf32>
    %435 = arith.addf %431, %434 : vector<16x16xf32>
    %436 = vector.broadcast %41 : f32 to vector<16x16xf32>
    %437 = arith.mulf %436, %388 : vector<16x16xf32>
    %438 = arith.addf %435, %437 : vector<16x16xf32>
    %c15_i32_114 = arith.constant 15 : i32
    %439 = tpu.dynamic_rotate %388 by %c15_i32_114 dim 1 : vector<16x16xf32>, i32 -> vector<16x16xf32>
    %440 = vector.broadcast %44 : f32 to vector<16x16xf32>
    %441 = arith.mulf %440, %439 : vector<16x16xf32>
    %442 = arith.addf %438, %441 : vector<16x16xf32>
    %c14_i32_115 = arith.constant 14 : i32
    %443 = tpu.dynamic_rotate %388 by %c14_i32_115 dim 1 : vector<16x16xf32>, i32 -> vector<16x16xf32>
    %444 = vector.broadcast %47 : f32 to vector<16x16xf32>
    %445 = arith.mulf %444, %443 : vector<16x16xf32>
    %446 = arith.addf %442, %445 : vector<16x16xf32>
    %c15_i32_116 = arith.constant 15 : i32
    %447 = tpu.dynamic_rotate %388 by %c15_i32_116 dim 0 : vector<16x16xf32>, i32 -> vector<16x16xf32>
    %c2_i32_117 = arith.constant 2 : i32
    %448 = tpu.dynamic_rotate %447 by %c2_i32_117 dim 1 : vector<16x16xf32>, i32 -> vector<16x16xf32>
    %449 = vector.broadcast %50 : f32 to vector<16x16xf32>
    %450 = arith.mulf %449, %448 : vector<16x16xf32>
    %451 = arith.addf %446, %450 : vector<16x16xf32>
    %c1_i32_118 = arith.constant 1 : i32
    %452 = tpu.dynamic_rotate %447 by %c1_i32_118 dim 1 : vector<16x16xf32>, i32 -> vector<16x16xf32>
    %453 = vector.broadcast %53 : f32 to vector<16x16xf32>
    %454 = arith.mulf %453, %452 : vector<16x16xf32>
    %455 = arith.addf %451, %454 : vector<16x16xf32>
    %456 = vector.broadcast %56 : f32 to vector<16x16xf32>
    %457 = arith.mulf %456, %447 : vector<16x16xf32>
    %458 = arith.addf %455, %457 : vector<16x16xf32>
    %c15_i32_119 = arith.constant 15 : i32
    %459 = tpu.dynamic_rotate %447 by %c15_i32_119 dim 1 : vector<16x16xf32>, i32 -> vector<16x16xf32>
    %460 = vector.broadcast %59 : f32 to vector<16x16xf32>
    %461 = arith.mulf %460, %459 : vector<16x16xf32>
    %462 = arith.addf %458, %461 : vector<16x16xf32>
    %c14_i32_120 = arith.constant 14 : i32
    %463 = tpu.dynamic_rotate %447 by %c14_i32_120 dim 1 : vector<16x16xf32>, i32 -> vector<16x16xf32>
    %464 = vector.broadcast %62 : f32 to vector<16x16xf32>
    %465 = arith.mulf %464, %463 : vector<16x16xf32>
    %466 = arith.addf %462, %465 : vector<16x16xf32>
    %c14_i32_121 = arith.constant 14 : i32
    %467 = tpu.dynamic_rotate %388 by %c14_i32_121 dim 0 : vector<16x16xf32>, i32 -> vector<16x16xf32>
    %c2_i32_122 = arith.constant 2 : i32
    %468 = tpu.dynamic_rotate %467 by %c2_i32_122 dim 1 : vector<16x16xf32>, i32 -> vector<16x16xf32>
    %469 = vector.broadcast %65 : f32 to vector<16x16xf32>
    %470 = arith.mulf %469, %468 : vector<16x16xf32>
    %471 = arith.addf %466, %470 : vector<16x16xf32>
    %c1_i32_123 = arith.constant 1 : i32
    %472 = tpu.dynamic_rotate %467 by %c1_i32_123 dim 1 : vector<16x16xf32>, i32 -> vector<16x16xf32>
    %473 = vector.broadcast %68 : f32 to vector<16x16xf32>
    %474 = arith.mulf %473, %472 : vector<16x16xf32>
    %475 = arith.addf %471, %474 : vector<16x16xf32>
    %476 = vector.broadcast %71 : f32 to vector<16x16xf32>
    %477 = arith.mulf %476, %467 : vector<16x16xf32>
    %478 = arith.addf %475, %477 : vector<16x16xf32>
    %c15_i32_124 = arith.constant 15 : i32
    %479 = tpu.dynamic_rotate %467 by %c15_i32_124 dim 1 : vector<16x16xf32>, i32 -> vector<16x16xf32>
    %480 = vector.broadcast %74 : f32 to vector<16x16xf32>
    %481 = arith.mulf %480, %479 : vector<16x16xf32>
    %482 = arith.addf %478, %481 : vector<16x16xf32>
    %c14_i32_125 = arith.constant 14 : i32
    %483 = tpu.dynamic_rotate %467 by %c14_i32_125 dim 1 : vector<16x16xf32>, i32 -> vector<16x16xf32>
    %484 = vector.broadcast %77 : f32 to vector<16x16xf32>
    %485 = arith.mulf %484, %483 : vector<16x16xf32>
    %486 = arith.addf %482, %485 : vector<16x16xf32>
    %c0_126 = arith.constant 0 : index
    %c3_127 = arith.constant 3 : index
    %c0_128 = arith.constant 0 : index
    %c0_129 = arith.constant 0 : index
    %487 = vector.load %arg3[%c0_126, %c3_127, %c0_128, %c0_129] : memref<1x4x16x16xf32, #tpu.memory_space<vmem>>, vector<1x1x16x16xf32>
    %488 = vector.shape_cast %487 : vector<1x1x16x16xf32> to vector<16x16xf32>
    %489 = vector.shape_cast %486 : vector<16x16xf32> to vector<1x1x16x16xf32>
    tpu.vector_store %arg3[%c0_126, %c3_127, %c0_128, %c0_129], %489 {strides = array<i32>} : memref<1x4x16x16xf32, #tpu.memory_space<vmem>>, vector<1x1x16x16xf32>,
    return
  }
  func.func @transform_0(%arg0: i32) -> i32 {
    %c0_i32 = arith.constant 0 : i32
    %c0_i32_0 = arith.constant 0 : i32
    return %c0_i32 : i32
  }
  func.func @transform_1(%arg0: i32) -> (i32, i32, i32, i32) {
    %c0_i32 = arith.constant 0 : i32
    %c0_i32_0 = arith.constant 0 : i32
    %c0_i32_1 = arith.constant 0 : i32
    %c0_i32_2 = arith.constant 0 : i32
    return %arg0, %c0_i32, %c0_i32_0, %c0_i32_1 : i32, i32, i32, i32
  }
  func.func @transform_2(%arg0: i32) -> (i32, i32, i32, i32) {
    %c0_i32 = arith.constant 0 : i32
    %c0_i32_0 = arith.constant 0 : i32
    %c0_i32_1 = arith.constant 0 : i32
    %c0_i32_2 = arith.constant 0 : i32
    return %arg0, %c0_i32, %c0_i32_0, %c0_i32_1 : i32, i32, i32, i32
  }
}

</mosaic_0001>

<llo_original>
// kernel: tpu_custom_call.1
$region0: #{tpu_custom_call.1}
  #allocation0 [shape = 'u32[]', space=smem, size = 0x4, offset = 0x4, fixed_abs, tag = 'smem constant byte address 0x4 - core index']
  #allocation1 [shape = 'u32[72,128]{1,0:T(1,128)}', space=vmem, size = 0x9000, scoped, tag = 'internal scratch']
  %s0 = inlined_call_operand.hbm [shape: f32[50], index: 0, kind: input, shape index: {}]
  %s1 = inlined_call_operand.hbm [shape: f32[2,4,16,16], index: 1, kind: input, shape index: {}]
  %s2 = inlined_call_operand.hbm [shape: f32[2,4,16,16], index: 2, kind: output, shape index: {}]
  %s3 = sld [smem:[#allocation0]]
  $region49: #{tpu_custom_call.1} parent=0
    _
  %s5 = ssub.s32 1, %s3
  %s6 = scalar_select 0, %s5, %s3
  $region1: #{tpu_custom_call.1} parent=0
    #allocation2 [shape = 'u8[512]{0}', space=smem, size = 0x200, scoped, tag = 'input window, operand 0, single buffered']
    #allocation3 [shape = 's32[2]{0}', space=sflag, size = 0x8, scoped, tag = 'scoped memory for tpu_custom_call.1']
    #allocation4 [shape = 's32[2]{0}', space=sflag, size = 0x8, scoped, tag = 'scoped memory for tpu_custom_call.1']
    #allocation5 [shape = 's32[2]{0}', space=sflag, size = 0x8, scoped, tag = 'scoped memory for tpu_custom_call.1']
    #allocation6 [shape = 'u8[65536]{0}', space=vmem, size = 0x10000, scoped, tag = 'input window, operand 1']
    #allocation7 [shape = 'u8[65536]{0}', space=vmem, size = 0x10000, scoped, tag = 'output window, operand 0']
    %7 = vsyncpa [#allocation5], 0
    %8 = vsyncpa [#allocation3], 0
    %s9 = scalar_lea.sflag [#allocation3], 1
    %10 = vsyncpa %s9, 0
    %11 = vsyncpa [#allocation4], 0
    %s12 = scalar_lea.sflag [#allocation4], 1
    %13 = vsyncpa %s12, 0
    loop: start=0, step=1, limit=4
    $region2: #{tpu_custom_call.1} parent=1 // loop_pre_header
      _
    $region3: #{tpu_custom_call.1} parent=1 // loop_header
      %s15 = sphi 0, %s19
      %p16 = scmp.ge.s32.totalorder %s15, 4
      %s23 = sphi 0, %s23
      %s25 = sphi 0, %s23
      %s26 = sphi 0, %s25
      %s40 = sphi 0, %s26
      %s46 = sphi 0, %s48
      %s49 = sphi 0, %s46
      %s50 = sphi 0, %s49
      %s66 = sphi 0, %s50
      %s72 = sphi 0, %s74
      %s75 = sphi 0, %s72
      %s76 = sphi 0, %s75
      %s92 = sphi 0, %s76
    $region4: #{tpu_custom_call.1} parent=1 // loop_header_branch
      %18 = sbr.rel (%p16) target = $region8
    $region5: #{tpu_custom_call.1} parent=1 // loop_body
      %s20 = ssub.s32 %s15, 1
      %s21 = ssub.s32 %s15, 2
      %s22 = sadd.s32 %s15, 1
      %s24 = sadd.s32 %s23, 1
      %p27 = scmp.eq.s32.totalorder %s15, 1
      %p28 = scmp.ne.s32.totalorder %s23, %s25
      %p29 = scmp.eq.s32.totalorder %s15, 0
      %p30 = por %p28, %p29
      %p31 = scmp.ne.s32.totalorder %s23, %s25
      %p32 = scmp.eq.s32.totalorder %s20, 1
      %p33 = por %p31, %p32
      %p34 = scmp.ne.s32.totalorder %s25, %s26
      %p35 = scmp.eq.s32.totalorder %s20, 0
      %p36 = por %p34, %p35
      %p37 = scmp.ne.s32.totalorder %s25, %s26
      %p38 = scmp.eq.s32.totalorder %s21, 1
      %p39 = por %p37, %p38
      %p41 = scmp.ne.s32.totalorder %s26, %s40
      %p42 = scmp.eq.s32.totalorder %s21, 0
      %p43 = por %p41, %p42
      %s44 = ssub.s32 %s15, %s22
      %p45 = scmp.eq.s32.totalorder %s44, 0
      %s47 = sadd.s32 %s46, 1
      %s48 = scalar_select %p45, %s46, %s47
      %p51 = pneg %p45
      %p52 = scmp.eq.s32.totalorder %s15, 1
      %p53 = por %p51, %p52
      %p54 = scmp.ne.s32.totalorder %s46, %s49
      %p55 = scmp.eq.s32.totalorder %s15, 0
      %p56 = por %p54, %p55
      %p57 = scmp.ne.s32.totalorder %s46, %s49
      %p58 = scmp.eq.s32.totalorder %s20, 1
      %p59 = por %p57, %p58
      %p60 = scmp.ne.s32.totalorder %s49, %s50
      %p61 = scmp.eq.s32.totalorder %s20, 0
      %p62 = por %p60, %p61
      %p63 = scmp.ne.s32.totalorder %s49, %s50
      %p64 = scmp.eq.s32.totalorder %s21, 1
      %p65 = por %p63, %p64
      %p67 = scmp.ne.s32.totalorder %s50, %s66
      %p68 = scmp.eq.s32.totalorder %s21, 0
      %p69 = por %p67, %p68
      %s70 = ssub.s32 %s15, %s22
      %p71 = scmp.eq.s32.totalorder %s70, 0
      %s73 = sadd.s32 %s72, 1
      %s74 = scalar_select %p71, %s72, %s73
      %p77 = pneg %p71
      %p78 = scmp.eq.s32.totalorder %s15, 1
      %p79 = por %p77, %p78
      %p80 = scmp.ne.s32.totalorder %s72, %s75
      %p81 = scmp.eq.s32.totalorder %s15, 0
      %p82 = por %p80, %p81
      %p83 = scmp.ne.s32.totalorder %s72, %s75
      %p84 = scmp.eq.s32.totalorder %s20, 1
      %p85 = por %p83, %p84
      %p86 = scmp.ne.s32.totalorder %s75, %s76
      %p87 = scmp.eq.s32.totalorder %s20, 0
      %p88 = por %p86, %p87
      %p89 = scmp.ne.s32.totalorder %s75, %s76
      %p90 = scmp.eq.s32.totalorder %s21, 1
      %p91 = por %p89, %p90
      %p93 = scmp.ne.s32.totalorder %s76, %s92
      %p94 = scmp.eq.s32.totalorder %s21, 0
      %p95 = por %p93, %p94
      %p96 = scmp.le.s32.totalorder 1, %s15
      %p97 = scmp.lt.s32.totalorder %s15, 3
      %p98 = pnand %p96, %p97
      %p99 = pneg %p98
      // Predicated region
      $region9: #{tpu_custom_call.1} parent=5 // pred_check
        _
      $region10: #{tpu_custom_call.1} parent=5 // pred_check_branch
        %101 = sbr.rel (%p98) target = $region12
      $region11: #{tpu_custom_call.1} parent=5 // pred_region
        %s102 = ssub.s32 %s15, 1
        // Predicated region
        $region13: #{tpu_custom_call.1} parent=11 // pred_check
          %p103 = pneg %p36
        $region14: #{tpu_custom_call.1} parent=11 // pred_check_branch
          %105 = sbr.rel (%p103) target = $region16
        $region15: #{tpu_custom_call.1} parent=11 // pred_region
          %107 = vsyncadd [#allocation5], 0
          %s109 = sshll.u32 %s0, 4
          %s110 = int_to_ptr.hbm [resolvable:$true] %s109
          %112 = dma.hbm_to_smem %s110, 16, [#allocation2], [#allocation5]
        $region16: #{tpu_custom_call.1} parent=11 // pred_fallthru
          _
      $region12: #{tpu_custom_call.1} parent=5 // pred_fallthru
        _
      %p113 = scmp.lt.s32.totalorder %s15, 2
      // Predicated region
      $region17: #{tpu_custom_call.1} parent=5 // pred_check
        %p114 = pneg %p113
      $region18: #{tpu_custom_call.1} parent=5 // pred_check_branch
        %116 = sbr.rel (%p114) target = $region20
      $region19: #{tpu_custom_call.1} parent=5 // pred_region
        // Predicated region
        $region21: #{tpu_custom_call.1} parent=19 // pred_check
          %p117 = pneg %p56
        $region22: #{tpu_custom_call.1} parent=19 // pred_check_branch
          %119 = sbr.rel (%p117) target = $region24
        $region23: #{tpu_custom_call.1} parent=19 // pred_region
          %s120 = sand.u32 %s46, 1
          %s121 = scalar_lea.sflag [#allocation3], %s120
          %s122 = sand.u32 %s46, 1
          %s123 = smul.addr %s122, 64
          %s124 = scalar_lea.vmem [#allocation6], %s123
          %126 = vsyncadd %s121, 0
          %s127 = smul.addr %s15, 8
          %s128 = smul.addr %s127, 8
          %s129 = scalar_lea.hbm %s1, %s128
          %s130 = sshll.u32 %s129, 4
          %s131 = int_to_ptr.hbm [resolvable:$true] %s130
          %s132 = sshll.u32 %s124, 4
          %s133 = int_to_ptr.vmem [resolvable:$true] %s132
          %138 = dma.hbm_to_vmem [thread:$0]  %s131, 1024, %s133, %s121, 128, 128, 8
        $region24: #{tpu_custom_call.1} parent=19 // pred_fallthru
          _
      $region20: #{tpu_custom_call.1} parent=5 // pred_fallthru
        _
      %p139 = scmp.le.s32.totalorder 1, %s15
      %p140 = scmp.lt.s32.totalorder %s15, 3
      %p141 = pnand %p139, %p140
      %p142 = pneg %p141
      // Predicated region
      $region25: #{tpu_custom_call.1} parent=5 // pred_check
        _
      $region26: #{tpu_custom_call.1} parent=5 // pred_check_branch
        %144 = sbr.rel (%p141) target = $region28
      $region27: #{tpu_custom_call.1} parent=5 // pred_region
        %s145 = ssub.s32 %s15, 1
        // Predicated region
        $region29: #{tpu_custom_call.1} parent=27 // pred_check
          %p146 = pneg %p36
        $region30: #{tpu_custom_call.1} parent=27 // pred_check_branch
          %148 = sbr.rel (%p146) target = $region32
        $region31: #{tpu_custom_call.1} parent=27 // pred_region
          %150 = dma.done [#allocation5], 16
        $region32: #{tpu_custom_call.1} parent=27 // pred_fallthru
          _
        %s151 = sand.u32 %s49, 1
        %s152 = scalar_lea.sflag [#allocation3], %s151
        %s153 = sand.u32 %s49, 1
        %s154 = smul.addr %s153, 64
        %s155 = scalar_lea.vmem [#allocation6], %s154
        // Predicated region
        $region33: #{tpu_custom_call.1} parent=27 // pred_check
          %p156 = pneg %p62
        $region34: #{tpu_custom_call.1} parent=27 // pred_check_branch
          %158 = sbr.rel (%p156) target = $region36
        $region35: #{tpu_custom_call.1} parent=27 // pred_region
          %160 = dma.done %s152, 1024
        $region36: #{tpu_custom_call.1} parent=27 // pred_fallthru
          _
        %161 = sfence
        %p162 = pneg %p36
        %p163 = pneg %p33
        %s164 = sand.u32 %s49, 1
        %s165 = scalar_lea.sflag [#allocation3], %s164
        %s166 = sand.u32 %s49, 1
        %s167 = smul.addr %s166, 64
        %s168 = scalar_lea.vmem [#allocation6], %s167
        %p169 = pneg %p62
        %p170 = pneg %p59
        %p171 = pneg %p88
        %p172 = pneg %p85
        %s173 = sand.u32 %s75, 1
        %s174 = scalar_lea.sflag [#allocation4], %s173
        %s175 = sand.u32 %s75, 1
        %s176 = smul.addr %s175, 64
        %s177 = scalar_lea.vmem [#allocation7], %s176
        %s178 = smul.u32 %s20, 25
        %s179 = sld [smem:[#allocation2 + %s178]]
        %s180 = sadd.s32 %s178, 1
        %s181 = sld [smem:[#allocation2 + %s180]]
        %s182 = sadd.s32 %s178, 2
        %s183 = sld [smem:[#allocation2 + %s182]]
        %s184 = sadd.s32 %s178, 3
        %s185 = sld [smem:[#allocation2 + %s184]]
        %s186 = sadd.s32 %s178, 4
        %s187 = sld [smem:[#allocation2 + %s186]]
        %s188 = sadd.s32 %s178, 5
        %s189 = sld [smem:[#allocation2 + %s188]]
        %s190 = sadd.s32 %s178, 6
        %s191 = sld [smem:[#allocation2 + %s190]]
        %s192 = sadd.s32 %s178, 7
        %s193 = sld [smem:[#allocation2 + %s192]]
        %s194 = sadd.s32 %s178, 8
        %s195 = sld [smem:[#allocation2 + %s194]]
        %s196 = sadd.s32 %s178, 9
        %s197 = sld [smem:[#allocation2 + %s196]]
        %s198 = sadd.s32 %s178, 10
        %s199 = sld [smem:[#allocation2 + %s198]]
        %s200 = sadd.s32 %s178, 11
        %s201 = sld [smem:[#allocation2 + %s200]]
        %s202 = sadd.s32 %s178, 12
        %s203 = sld [smem:[#allocation2 + %s202]]
        %s204 = sadd.s32 %s178, 13
        %s205 = sld [smem:[#allocation2 + %s204]]
        %s206 = sadd.s32 %s178, 14
        %s207 = sld [smem:[#allocation2 + %s206]]
        %s208 = sadd.s32 %s178, 15
        %s209 = sld [smem:[#allocation2 + %s208]]
        %s210 = sadd.s32 %s178, 16
        %s211 = sld [smem:[#allocation2 + %s210]]
        %s212 = sadd.s32 %s178, 17
        %s213 = sld [smem:[#allocation2 + %s212]]
        %s214 = sadd.s32 %s178, 18
        %s215 = sld [smem:[#allocation2 + %s214]]
        %s216 = sadd.s32 %s178, 19
        %s217 = sld [smem:[#allocation2 + %s216]]
        %s218 = sadd.s32 %s178, 20
        %s219 = sld [smem:[#allocation2 + %s218]]
        %s220 = sadd.s32 %s178, 21
        %s221 = sld [smem:[#allocation2 + %s220]]
        %s222 = sadd.s32 %s178, 22
        %s223 = sld [smem:[#allocation2 + %s222]]
        %s224 = sadd.s32 %s178, 23
        %s225 = sld [smem:[#allocation2 + %s224]]
        %s226 = sadd.s32 %s178, 24
        %s227 = sld [smem:[#allocation2 + %s226]]
        %v228 = vld [vmem:[%s155] sm:$0xff]
        %v229 = vld [vmem:[%s155 + $0x8] sm:$0xff]
        %v230 = vrot.slane %v228, 6
        %v231 = vrot.slane %v229, 6
        %v232 = vlaneseq
        %v233 = vshrl.u32 %v232, 7
        %vm234 = vcmp.lt.s32.totalorder %v233, 2
        %v235 = vsel %vm234, %v230, %v231
        %v236 = vsel %vm234, %v231, %v230
        %vm237 = vcmask 1047680
        %238 = vrot.lane.b32.xlu0 %v236, 16
        %v239 = vpop.permute.xlu0 %238
        %v240 = vsel %vm237, %v239, %v236
        %241 = vrot.lane.b32.xlu0 %v235, 16
        %v242 = vpop.permute.xlu0 %241
        %v243 = vsel %vm237, %v242, %v235
        %244 = vrot.lane.b32.xlu0 %v240, 16
        %v245 = vpop.permute.xlu0 %244
        %246 = vrot.lane.b32.xlu0 %v243, 16
        %v247 = vpop.permute.xlu0 %246
        %v248 = vsel %vm237, %v245, %v236
        %v249 = vsel %vm237, %v247, %v235
        %v250 = vstv %s179
        %v251 = vmul.f32 %v250, %v248
        %v252 = vmul.f32 %v250, %v249
        %v253 = vstv %s181
        %v254 = vmul.f32 %v253, %v248
        %v255 = vmul.f32 %v253, %v249
        %258 = vrot.lane.b32.xlu0 %v254, 127
        %v259 = vpop.permute.xlu0 %258
        %260 = vrot.lane.b32.xlu0 %v255, 127
        %v261 = vpop.permute.xlu0 %260
        %v264 = vadd.f32 %v251, %v259
        %v265 = vadd.f32 %v252, %v261
        %v266 = vstv %s183
        %v267 = vmul.f32 %v266, %v236
        %v268 = vmul.f32 %v266, %v235
        %271 = vrot.lane.b32.xlu0 %v267, 14
        %v272 = vpop.permute.xlu0 %271
        %273 = vrot.lane.b32.xlu0 %v268, 14
        %v274 = vpop.permute.xlu0 %273
        %v277 = vadd.f32 %v264, %v272
        %v278 = vadd.f32 %v265, %v274
        %v279 = vstv %s185
        %v280 = vmul.f32 %v279, %v248
        %v281 = vmul.f32 %v279, %v249
        %284 = vrot.lane.b32.xlu0 %v280, 13
        %v285 = vpop.permute.xlu0 %284
        %286 = vrot.lane.b32.xlu0 %v281, 13
        %v287 = vpop.permute.xlu0 %286
        %v290 = vadd.f32 %v277, %v285
        %v291 = vadd.f32 %v278, %v287
        %v292 = vstv %s187
        %v293 = vmul.f32 %v292, %v248
        %v294 = vmul.f32 %v292, %v249
        %297 = vrot.lane.b32.xlu0 %v293, 12
        %v298 = vpop.permute.xlu0 %297
        %299 = vrot.lane.b32.xlu0 %v294, 12
        %v300 = vpop.permute.xlu0 %299
        %v303 = vadd.f32 %v290, %v298
        %v304 = vadd.f32 %v291, %v300
        %v305 = vrot.slane %v228, 7
        %v306 = vrot.slane %v229, 7
        %vm307 = vcmp.lt.s32.totalorder %v233, 1
        %v308 = vsel %vm307, %v305, %v306
        %v309 = vsel %vm307, %v306, %v305
        %310 = vrot.lane.b32.xlu0 %v309, 16
        %v311 = vpop.permute.xlu0 %310
        %v312 = vsel %vm237, %v311, %v309
        %313 = vrot.lane.b32.xlu0 %v308, 16
        %v314 = vpop.permute.xlu0 %313
        %v315 = vsel %vm237, %v314, %v308
        %316 = vrot.lane.b32.xlu0 %v312, 16
        %v317 = vpop.permute.xlu0 %316
        %318 = vrot.lane.b32.xlu0 %v315, 16
        %v319 = vpop.permute.xlu0 %318
        %v320 = vsel %vm237, %v317, %v309
        %v321 = vsel %vm237, %v319, %v308
        %v322 = vstv %s189
        %v323 = vmul.f32 %v322, %v320
        %v324 = vmul.f32 %v322, %v321
        %v325 = vadd.f32 %v303, %v323
        %v326 = vadd.f32 %v304, %v324
        %v327 = vstv %s191
        %v328 = vmul.f32 %v327, %v320
        %v329 = vmul.f32 %v327, %v321
        %332 = vrot.lane.b32.xlu0 %v328, 127
        %v333 = vpop.permute.xlu0 %332
        %334 = vrot.lane.b32.xlu0 %v329, 127
        %v335 = vpop.permute.xlu0 %334
        %v338 = vadd.f32 %v325, %v333
        %v339 = vadd.f32 %v326, %v335
        %v340 = vstv %s193
        %v341 = vmul.f32 %v340, %v309
        %v342 = vmul.f32 %v340, %v308
        %345 = vrot.lane.b32.xlu0 %v341, 14
        %v346 = vpop.permute.xlu0 %345
        %347 = vrot.lane.b32.xlu0 %v342, 14
        %v348 = vpop.permute.xlu0 %347
        %v351 = vadd.f32 %v338, %v346
        %v352 = vadd.f32 %v339, %v348
        %v353 = vstv %s195
        %v354 = vmul.f32 %v353, %v320
        %v355 = vmul.f32 %v353, %v321
        %358 = vrot.lane.b32.xlu0 %v354, 13
        %v359 = vpop.permute.xlu0 %358
        %360 = vrot.lane.b32.xlu0 %v355, 13
        %v361 = vpop.permute.xlu0 %360
        %v364 = vadd.f32 %v351, %v359
        %v365 = vadd.f32 %v352, %v361
        %v366 = vstv %s197
        %v367 = vmul.f32 %v366, %v320
        %v368 = vmul.f32 %v366, %v321
        %371 = vrot.lane.b32.xlu0 %v367, 12
        %v372 = vpop.permute.xlu0 %371
        %373 = vrot.lane.b32.xlu0 %v368, 12
        %v374 = vpop.permute.xlu0 %373
        %v377 = vadd.f32 %v364, %v372
        %v378 = vadd.f32 %v365, %v374
        %379 = vrot.lane.b32.xlu0 %v228, 16
        %v380 = vpop.permute.xlu0 %379
        %v381 = vsel %vm237, %v380, %v228
        %382 = vrot.lane.b32.xlu0 %v229, 16
        %v383 = vpop.permute.xlu0 %382
        %v384 = vsel %vm237, %v383, %v229
        %385 = vrot.lane.b32.xlu0 %v381, 16
        %v386 = vpop.permute.xlu0 %385
        %387 = vrot.lane.b32.xlu0 %v384, 16
        %v388 = vpop.permute.xlu0 %387
        %v389 = vsel %vm237, %v386, %v228
        %v390 = vsel %vm237, %v388, %v229
        %v391 = vstv %s199
        %v392 = vmul.f32 %v391, %v389
        %v393 = vmul.f32 %v391, %v390
        %v394 = vadd.f32 %v377, %v392
        %v395 = vadd.f32 %v378, %v393
        %v396 = vstv %s201
        %v397 = vmul.f32 %v396, %v389
        %v398 = vmul.f32 %v396, %v390
        %401 = vrot.lane.b32.xlu0 %v397, 127
        %v402 = vpop.permute.xlu0 %401
        %403 = vrot.lane.b32.xlu0 %v398, 127
        %v404 = vpop.permute.xlu0 %403
        %v407 = vadd.f32 %v394, %v402
        %v408 = vadd.f32 %v395, %v404
        %v409 = vstv %s203
        %v410 = vmul.f32 %v409, %v228
        %v411 = vmul.f32 %v409, %v229
        %414 = vrot.lane.b32.xlu0 %v410, 14
        %v415 = vpop.permute.xlu0 %414
        %416 = vrot.lane.b32.xlu0 %v411, 14
        %v417 = vpop.permute.xlu0 %416
        %v420 = vadd.f32 %v407, %v415
        %v421 = vadd.f32 %v408, %v417
        %v422 = vstv %s205
        %v423 = vmul.f32 %v422, %v389
        %v424 = vmul.f32 %v422, %v390
        %427 = vrot.lane.b32.xlu0 %v423, 13
        %v428 = vpop.permute.xlu0 %427
        %429 = vrot.lane.b32.xlu0 %v424, 13
        %v430 = vpop.permute.xlu0 %429
        %v433 = vadd.f32 %v420, %v428
        %v434 = vadd.f32 %v421, %v430
        %v435 = vstv %s207
        %v436 = vmul.f32 %v435, %v389
        %v437 = vmul.f32 %v435, %v390
        %440 = vrot.lane.b32.xlu0 %v436, 12
        %v441 = vpop.permute.xlu0 %440
        %442 = vrot.lane.b32.xlu0 %v437, 12
        %v443 = vpop.permute.xlu0 %442
        %v446 = vadd.f32 %v433, %v441
        %v447 = vadd.f32 %v434, %v443
        %v448 = vrot.slane %v228, 1
        %v449 = vrot.slane %v229, 1
        %vm450 = vcmp.lt.s32.totalorder %v233, 7
        %v451 = vsel %vm450, %v448, %v449
        %v452 = vsel %vm450, %v449, %v448
        %453 = vrot.lane.b32.xlu0 %v451, 16
        %v454 = vpop.permute.xlu0 %453
        %v455 = vsel %vm237, %v454, %v451
        %456 = vrot.lane.b32.xlu0 %v452, 16
        %v457 = vpop.permute.xlu0 %456
        %v458 = vsel %vm237, %v457, %v452
        %459 = vrot.lane.b32.xlu0 %v455, 16
        %v460 = vpop.permute.xlu0 %459
        %461 = vrot.lane.b32.xlu0 %v458, 16
        %v462 = vpop.permute.xlu0 %461
        %v463 = vsel %vm237, %v460, %v451
        %v464 = vsel %vm237, %v462, %v452
        %v465 = vstv %s209
        %v466 = vmul.f32 %v465, %v463
        %v467 = vmul.f32 %v465, %v464
        %v468 = vadd.f32 %v446, %v466
        %v469 = vadd.f32 %v447, %v467
        %v470 = vstv %s211
        %v471 = vmul.f32 %v470, %v463
        %v472 = vmul.f32 %v470, %v464
        %475 = vrot.lane.b32.xlu0 %v471, 127
        %v476 = vpop.permute.xlu0 %475
        %477 = vrot.lane.b32.xlu0 %v472, 127
        %v478 = vpop.permute.xlu0 %477
        %v481 = vadd.f32 %v468, %v476
        %v482 = vadd.f32 %v469, %v478
        %v483 = vstv %s213
        %v484 = vmul.f32 %v483, %v451
        %v485 = vmul.f32 %v483, %v452
        %488 = vrot.lane.b32.xlu0 %v484, 14
        %v489 = vpop.permute.xlu0 %488
        %490 = vrot.lane.b32.xlu0 %v485, 14
        %v491 = vpop.permute.xlu0 %490
        %v494 = vadd.f32 %v481, %v489
        %v495 = vadd.f32 %v482, %v491
        %v496 = vstv %s215
        %v497 = vmul.f32 %v496, %v463
        %v498 = vmul.f32 %v496, %v464
        %501 = vrot.lane.b32.xlu0 %v497, 13
        %v502 = vpop.permute.xlu0 %501
        %503 = vrot.lane.b32.xlu0 %v498, 13
        %v504 = vpop.permute.xlu0 %503
        %v507 = vadd.f32 %v494, %v502
        %v508 = vadd.f32 %v495, %v504
        %v509 = vstv %s217
        %v510 = vmul.f32 %v509, %v463
        %v511 = vmul.f32 %v509, %v464
        %514 = vrot.lane.b32.xlu0 %v510, 12
        %v515 = vpop.permute.xlu0 %514
        %516 = vrot.lane.b32.xlu0 %v511, 12
        %v517 = vpop.permute.xlu0 %516
        %v520 = vadd.f32 %v507, %v515
        %v521 = vadd.f32 %v508, %v517
        %v522 = vrot.slane %v228, 2
        %v523 = vrot.slane %v229, 2
        %vm524 = vcmp.lt.s32.totalorder %v233, 6
        %v525 = vsel %vm524, %v522, %v523
        %v526 = vsel %vm524, %v523, %v522
        %527 = vrot.lane.b32.xlu0 %v525, 16
        %v528 = vpop.permute.xlu0 %527
        %v529 = vsel %vm237, %v528, %v525
        %530 = vrot.lane.b32.xlu0 %v526, 16
        %v531 = vpop.permute.xlu0 %530
        %v532 = vsel %vm237, %v531, %v526
        %533 = vrot.lane.b32.xlu0 %v529, 16
        %v534 = vpop.permute.xlu0 %533
        %535 = vrot.lane.b32.xlu0 %v532, 16
        %v536 = vpop.permute.xlu0 %535
        %v537 = vsel %vm237, %v534, %v525
        %v538 = vsel %vm237, %v536, %v526
        %v539 = vstv %s219
        %v540 = vmul.f32 %v539, %v537
        %v541 = vmul.f32 %v539, %v538
        %v542 = vadd.f32 %v520, %v540
        %v543 = vadd.f32 %v521, %v541
        %v544 = vstv %s221
        %v545 = vmul.f32 %v544, %v537
        %v546 = vmul.f32 %v544, %v538
        %549 = vrot.lane.b32.xlu0 %v545, 127
        %v550 = vpop.permute.xlu0 %549
        %551 = vrot.lane.b32.xlu0 %v546, 127
        %v552 = vpop.permute.xlu0 %551
        %v555 = vadd.f32 %v542, %v550
        %v556 = vadd.f32 %v543, %v552
        %v557 = vstv %s223
        %v558 = vmul.f32 %v557, %v525
        %v559 = vmul.f32 %v557, %v526
        %562 = vrot.lane.b32.xlu0 %v558, 14
        %v563 = vpop.permute.xlu0 %562
        %564 = vrot.lane.b32.xlu0 %v559, 14
        %v565 = vpop.permute.xlu0 %564
        %v568 = vadd.f32 %v555, %v563
        %v569 = vadd.f32 %v556, %v565
        %v570 = vstv %s225
        %v571 = vmul.f32 %v570, %v537
        %v572 = vmul.f32 %v570, %v538
        %575 = vrot.lane.b32.xlu0 %v571, 13
        %v576 = vpop.permute.xlu0 %575
        %577 = vrot.lane.b32.xlu0 %v572, 13
        %v578 = vpop.permute.xlu0 %577
        %v581 = vadd.f32 %v568, %v576
        %v582 = vadd.f32 %v569, %v578
        %v583 = vstv %s227
        %v584 = vmul.f32 %v583, %v537
        %v585 = vmul.f32 %v583, %v538
        %588 = vrot.lane.b32.xlu0 %v584, 12
        %v589 = vpop.permute.xlu0 %588
        %590 = vrot.lane.b32.xlu0 %v585, 12
        %v591 = vpop.permute.xlu0 %590
        %v594 = vadd.f32 %v581, %v589
        %v595 = vadd.f32 %v582, %v591
        %598 = vrot.lane.b32.xlu0 %v594, 114
        %v599 = vpop.permute.xlu0 %598
        %600 = vrot.lane.b32.xlu0 %v595, 114
        %v601 = vpop.permute.xlu0 %600
        %vm604 = vcmask 130048
        %605 = vst.msk [vmem:[%s177] sm:$0xff] %vm604, %v599
        %606 = vst.msk [vmem:[%s177 + $0x8] sm:$0xff] %vm604, %v601
        %s607 = scalar_lea.vmem %s155, 16 [#allocation6]
        %v608 = vld [vmem:[%s607] sm:$0xff]
        %v609 = vld [vmem:[%s607 + $0x8] sm:$0xff]
        %v610 = vrot.slane %v608, 6
        %v611 = vrot.slane %v609, 6
        %v612 = vsel %vm234, %v610, %v611
        %v613 = vsel %vm234, %v611, %v610
        %614 = vrot.lane.b32.xlu0 %v613, 16
        %v615 = vpop.permute.xlu0 %614
        %v616 = vsel %vm237, %v615, %v613
        %617 = vrot.lane.b32.xlu0 %v612, 16
        %v618 = vpop.permute.xlu0 %617
        %v619 = vsel %vm237, %v618, %v612
        %620 = vrot.lane.b32.xlu0 %v616, 16
        %v621 = vpop.permute.xlu0 %620
        %622 = vrot.lane.b32.xlu0 %v619, 16
        %v623 = vpop.permute.xlu0 %622
        %v624 = vsel %vm237, %v621, %v613
        %v625 = vsel %vm237, %v623, %v612
        %v626 = vmul.f32 %v250, %v624
        %v627 = vmul.f32 %v250, %v625
        %v628 = vmul.f32 %v253, %v624
        %v629 = vmul.f32 %v253, %v625
        %632 = vrot.lane.b32.xlu0 %v628, 127
        %v633 = vpop.permute.xlu0 %632
        %634 = vrot.lane.b32.xlu0 %v629, 127
        %v635 = vpop.permute.xlu0 %634
        %v638 = vadd.f32 %v626, %v633
        %v639 = vadd.f32 %v627, %v635
        %v640 = vmul.f32 %v266, %v613
        %v641 = vmul.f32 %v266, %v612
        %644 = vrot.lane.b32.xlu0 %v640, 14
        %v645 = vpop.permute.xlu0 %644
        %646 = vrot.lane.b32.xlu0 %v641, 14
        %v647 = vpop.permute.xlu0 %646
        %v650 = vadd.f32 %v638, %v645
        %v651 = vadd.f32 %v639, %v647
        %v652 = vmul.f32 %v279, %v624
        %v653 = vmul.f32 %v279, %v625
        %656 = vrot.lane.b32.xlu0 %v652, 13
        %v657 = vpop.permute.xlu0 %656
        %658 = vrot.lane.b32.xlu0 %v653, 13
        %v659 = vpop.permute.xlu0 %658
        %v662 = vadd.f32 %v650, %v657
        %v663 = vadd.f32 %v651, %v659
        %v664 = vmul.f32 %v292, %v624
        %v665 = vmul.f32 %v292, %v625
        %668 = vrot.lane.b32.xlu0 %v664, 12
        %v669 = vpop.permute.xlu0 %668
        %670 = vrot.lane.b32.xlu0 %v665, 12
        %v671 = vpop.permute.xlu0 %670
        %v674 = vadd.f32 %v662, %v669
        %v675 = vadd.f32 %v663, %v671
        %v676 = vrot.slane %v608, 7
        %v677 = vrot.slane %v609, 7
        %v678 = vsel %vm307, %v676, %v677
        %v679 = vsel %vm307, %v677, %v676
        %680 = vrot.lane.b32.xlu0 %v679, 16
        %v681 = vpop.permute.xlu0 %680
        %v682 = vsel %vm237, %v681, %v679
        %683 = vrot.lane.b32.xlu0 %v678, 16
        %v684 = vpop.permute.xlu0 %683
        %v685 = vsel %vm237, %v684, %v678
        %686 = vrot.lane.b32.xlu0 %v682, 16
        %v687 = vpop.permute.xlu0 %686
        %688 = vrot.lane.b32.xlu0 %v685, 16
        %v689 = vpop.permute.xlu0 %688
        %v690 = vsel %vm237, %v687, %v679
        %v691 = vsel %vm237, %v689, %v678
        %v692 = vmul.f32 %v322, %v690
        %v693 = vmul.f32 %v322, %v691
        %v694 = vadd.f32 %v674, %v692
        %v695 = vadd.f32 %v675, %v693
        %v696 = vmul.f32 %v327, %v690
        %v697 = vmul.f32 %v327, %v691
        %700 = vrot.lane.b32.xlu0 %v696, 127
        %v701 = vpop.permute.xlu0 %700
        %702 = vrot.lane.b32.xlu0 %v697, 127
        %v703 = vpop.permute.xlu0 %702
        %v706 = vadd.f32 %v694, %v701
        %v707 = vadd.f32 %v695, %v703
        %v708 = vmul.f32 %v340, %v679
        %v709 = vmul.f32 %v340, %v678
        %712 = vrot.lane.b32.xlu0 %v708, 14
        %v713 = vpop.permute.xlu0 %712
        %714 = vrot.lane.b32.xlu0 %v709, 14
        %v715 = vpop.permute.xlu0 %714
        %v718 = vadd.f32 %v706, %v713
        %v719 = vadd.f32 %v707, %v715
        %v720 = vmul.f32 %v353, %v690
        %v721 = vmul.f32 %v353, %v691
        %724 = vrot.lane.b32.xlu0 %v720, 13
        %v725 = vpop.permute.xlu0 %724
        %726 = vrot.lane.b32.xlu0 %v721, 13
        %v727 = vpop.permute.xlu0 %726
        %v730 = vadd.f32 %v718, %v725
        %v731 = vadd.f32 %v719, %v727
        %v732 = vmul.f32 %v366, %v690
        %v733 = vmul.f32 %v366, %v691
        %736 = vrot.lane.b32.xlu0 %v732, 12
        %v737 = vpop.permute.xlu0 %736
        %738 = vrot.lane.b32.xlu0 %v733, 12
        %v739 = vpop.permute.xlu0 %738
        %v742 = vadd.f32 %v730, %v737
        %v743 = vadd.f32 %v731, %v739
        %744 = vrot.lane.b32.xlu0 %v608, 16
        %v745 = vpop.permute.xlu0 %744
        %v746 = vsel %vm237, %v745, %v608
        %747 = vrot.lane.b32.xlu0 %v609, 16
        %v748 = vpop.permute.xlu0 %747
        %v749 = vsel %vm237, %v748, %v609
        %750 = vrot.lane.b32.xlu0 %v746, 16
        %v751 = vpop.permute.xlu0 %750
        %752 = vrot.lane.b32.xlu0 %v749, 16
        %v753 = vpop.permute.xlu0 %752
        %v754 = vsel %vm237, %v751, %v608
        %v755 = vsel %vm237, %v753, %v609
        %v756 = vmul.f32 %v391, %v754
        %v757 = vmul.f32 %v391, %v755
        %v758 = vadd.f32 %v742, %v756
        %v759 = vadd.f32 %v743, %v757
        %v760 = vmul.f32 %v396, %v754
        %v761 = vmul.f32 %v396, %v755
        %764 = vrot.lane.b32.xlu0 %v760, 127
        %v765 = vpop.permute.xlu0 %764
        %766 = vrot.lane.b32.xlu0 %v761, 127
        %v767 = vpop.permute.xlu0 %766
        %v770 = vadd.f32 %v758, %v765
        %v771 = vadd.f32 %v759, %v767
        %v772 = vmul.f32 %v409, %v608
        %v773 = vmul.f32 %v409, %v609
        %776 = vrot.lane.b32.xlu0 %v772, 14
        %v777 = vpop.permute.xlu0 %776
        %778 = vrot.lane.b32.xlu0 %v773, 14
        %v779 = vpop.permute.xlu0 %778
        %v782 = vadd.f32 %v770, %v777
        %v783 = vadd.f32 %v771, %v779
        %v784 = vmul.f32 %v422, %v754
        %v785 = vmul.f32 %v422, %v755
        %788 = vrot.lane.b32.xlu0 %v784, 13
        %v789 = vpop.permute.xlu0 %788
        %790 = vrot.lane.b32.xlu0 %v785, 13
        %v791 = vpop.permute.xlu0 %790
        %v794 = vadd.f32 %v782, %v789
        %v795 = vadd.f32 %v783, %v791
        %v796 = vmul.f32 %v435, %v754
        %v797 = vmul.f32 %v435, %v755
        %800 = vrot.lane.b32.xlu0 %v796, 12
        %v801 = vpop.permute.xlu0 %800
        %802 = vrot.lane.b32.xlu0 %v797, 12
        %v803 = vpop.permute.xlu0 %802
        %v806 = vadd.f32 %v794, %v801
        %v807 = vadd.f32 %v795, %v803
        %v808 = vrot.slane %v608, 1
        %v809 = vrot.slane %v609, 1
        %v810 = vsel %vm450, %v808, %v809
        %v811 = vsel %vm450, %v809, %v808
        %812 = vrot.lane.b32.xlu0 %v810, 16
        %v813 = vpop.permute.xlu0 %812
        %v814 = vsel %vm237, %v813, %v810
        %815 = vrot.lane.b32.xlu0 %v811, 16
        %v816 = vpop.permute.xlu0 %815
        %v817 = vsel %vm237, %v816, %v811
        %818 = vrot.lane.b32.xlu0 %v814, 16
        %v819 = vpop.permute.xlu0 %818
        %820 = vrot.lane.b32.xlu0 %v817, 16
        %v821 = vpop.permute.xlu0 %820
        %v822 = vsel %vm237, %v819, %v810
        %v823 = vsel %vm237, %v821, %v811
        %v824 = vmul.f32 %v465, %v822
        %v825 = vmul.f32 %v465, %v823
        %v826 = vadd.f32 %v806, %v824
        %v827 = vadd.f32 %v807, %v825
        %v828 = vmul.f32 %v470, %v822
        %v829 = vmul.f32 %v470, %v823
        %832 = vrot.lane.b32.xlu0 %v828, 127
        %v833 = vpop.permute.xlu0 %832
        %834 = vrot.lane.b32.xlu0 %v829, 127
        %v835 = vpop.permute.xlu0 %834
        %v838 = vadd.f32 %v826, %v833
        %v839 = vadd.f32 %v827, %v835
        %v840 = vmul.f32 %v483, %v810
        %v841 = vmul.f32 %v483, %v811
        %844 = vrot.lane.b32.xlu0 %v840, 14
        %v845 = vpop.permute.xlu0 %844
        %846 = vrot.lane.b32.xlu0 %v841, 14
        %v847 = vpop.permute.xlu0 %846
        %v850 = vadd.f32 %v838, %v845
        %v851 = vadd.f32 %v839, %v847
        %v852 = vmul.f32 %v496, %v822
        %v853 = vmul.f32 %v496, %v823
        %856 = vrot.lane.b32.xlu0 %v852, 13
        %v857 = vpop.permute.xlu0 %856
        %858 = vrot.lane.b32.xlu0 %v853, 13
        %v859 = vpop.permute.xlu0 %858
        %v862 = vadd.f32 %v850, %v857
        %v863 = vadd.f32 %v851, %v859
        %v864 = vmul.f32 %v509, %v822
        %v865 = vmul.f32 %v509, %v823
        %868 = vrot.lane.b32.xlu0 %v864, 12
        %v869 = vpop.permute.xlu0 %868
        %870 = vrot.lane.b32.xlu0 %v865, 12
        %v871 = vpop.permute.xlu0 %870
        %v874 = vadd.f32 %v862, %v869
        %v875 = vadd.f32 %v863, %v871
        %v876 = vrot.slane %v608, 2
        %v877 = vrot.slane %v609, 2
        %v878 = vsel %vm524, %v876, %v877
        %v879 = vsel %vm524, %v877, %v876
        %880 = vrot.lane.b32.xlu0 %v878, 16
        %v881 = vpop.permute.xlu0 %880
        %v882 = vsel %vm237, %v881, %v878
        %883 = vrot.lane.b32.xlu0 %v879, 16
        %v884 = vpop.permute.xlu0 %883
        %v885 = vsel %vm237, %v884, %v879
        %886 = vrot.lane.b32.xlu0 %v882, 16
        %v887 = vpop.permute.xlu0 %886
        %888 = vrot.lane.b32.xlu0 %v885, 16
        %v889 = vpop.permute.xlu0 %888
        %v890 = vsel %vm237, %v887, %v878
        %v891 = vsel %vm237, %v889, %v879
        %v892 = vmul.f32 %v539, %v890
        %v893 = vmul.f32 %v539, %v891
        %v894 = vadd.f32 %v874, %v892
        %v895 = vadd.f32 %v875, %v893
        %v896 = vmul.f32 %v544, %v890
        %v897 = vmul.f32 %v544, %v891
        %900 = vrot.lane.b32.xlu0 %v896, 127
        %v901 = vpop.permute.xlu0 %900
        %902 = vrot.lane.b32.xlu0 %v897, 127
        %v903 = vpop.permute.xlu0 %902
        %v906 = vadd.f32 %v894, %v901
        %v907 = vadd.f32 %v895, %v903
        %v908 = vmul.f32 %v557, %v878
        %v909 = vmul.f32 %v557, %v879
        %912 = vrot.lane.b32.xlu0 %v908, 14
        %v913 = vpop.permute.xlu0 %912
        %914 = vrot.lane.b32.xlu0 %v909, 14
        %v915 = vpop.permute.xlu0 %914
        %v918 = vadd.f32 %v906, %v913
        %v919 = vadd.f32 %v907, %v915
        %v920 = vmul.f32 %v570, %v890
        %v921 = vmul.f32 %v570, %v891
        %924 = vrot.lane.b32.xlu0 %v920, 13
        %v925 = vpop.permute.xlu0 %924
        %926 = vrot.lane.b32.xlu0 %v921, 13
        %v927 = vpop.permute.xlu0 %926
        %v930 = vadd.f32 %v918, %v925
        %v931 = vadd.f32 %v919, %v927
        %v932 = vmul.f32 %v583, %v890
        %v933 = vmul.f32 %v583, %v891
        %936 = vrot.lane.b32.xlu0 %v932, 12
        %v937 = vpop.permute.xlu0 %936
        %938 = vrot.lane.b32.xlu0 %v933, 12
        %v939 = vpop.permute.xlu0 %938
        %v942 = vadd.f32 %v930, %v937
        %v943 = vadd.f32 %v931, %v939
        %946 = vrot.lane.b32.xlu0 %v942, 114
        %v947 = vpop.permute.xlu0 %946
        %948 = vrot.lane.b32.xlu0 %v943, 114
        %v949 = vpop.permute.xlu0 %948
        %s952 = scalar_lea.vmem %s177, 16 [#allocation7]
        %953 = vst.msk [vmem:[%s952] sm:$0xff] %vm604, %v947
        %954 = vst.msk [vmem:[%s952 + $0x8] sm:$0xff] %vm604, %v949
        %s955 = scalar_lea.vmem %s155, 32 [#allocation6]
        %v956 = vld [vmem:[%s955] sm:$0xff]
        %v957 = vld [vmem:[%s955 + $0x8] sm:$0xff]
        %v958 = vrot.slane %v956, 6
        %v959 = vrot.slane %v957, 6
        %v960 = vsel %vm234, %v958, %v959
        %v961 = vsel %vm234, %v959, %v958
        %962 = vrot.lane.b32.xlu0 %v961, 16
        %v963 = vpop.permute.xlu0 %962
        %v964 = vsel %vm237, %v963, %v961
        %965 = vrot.lane.b32.xlu0 %v960, 16
        %v966 = vpop.permute.xlu0 %965
        %v967 = vsel %vm237, %v966, %v960
        %968 = vrot.lane.b32.xlu0 %v964, 16
        %v969 = vpop.permute.xlu0 %968
        %970 = vrot.lane.b32.xlu0 %v967, 16
        %v971 = vpop.permute.xlu0 %970
        %v972 = vsel %vm237, %v969, %v961
        %v973 = vsel %vm237, %v971, %v960
        %v974 = vmul.f32 %v250, %v972
        %v975 = vmul.f32 %v250, %v973
        %v976 = vmul.f32 %v253, %v972
        %v977 = vmul.f32 %v253, %v973
        %980 = vrot.lane.b32.xlu0 %v976, 127
        %v981 = vpop.permute.xlu0 %980
        %982 = vrot.lane.b32.xlu0 %v977, 127
        %v983 = vpop.permute.xlu0 %982
        %v986 = vadd.f32 %v974, %v981
        %v987 = vadd.f32 %v975, %v983
        %v988 = vmul.f32 %v266, %v961
        %v989 = vmul.f32 %v266, %v960
        %992 = vrot.lane.b32.xlu0 %v988, 14
        %v993 = vpop.permute.xlu0 %992
        %994 = vrot.lane.b32.xlu0 %v989, 14
        %v995 = vpop.permute.xlu0 %994
        %v998 = vadd.f32 %v986, %v993
        %v999 = vadd.f32 %v987, %v995
        %v1000 = vmul.f32 %v279, %v972
        %v1001 = vmul.f32 %v279, %v973
        %1004 = vrot.lane.b32.xlu0 %v1000, 13
        %v1005 = vpop.permute.xlu0 %1004
        %1006 = vrot.lane.b32.xlu0 %v1001, 13
        %v1007 = vpop.permute.xlu0 %1006
        %v1010 = vadd.f32 %v998, %v1005
        %v1011 = vadd.f32 %v999, %v1007
        %v1012 = vmul.f32 %v292, %v972
        %v1013 = vmul.f32 %v292, %v973
        %1016 = vrot.lane.b32.xlu0 %v1012, 12
        %v1017 = vpop.permute.xlu0 %1016
        %1018 = vrot.lane.b32.xlu0 %v1013, 12
        %v1019 = vpop.permute.xlu0 %1018
        %v1022 = vadd.f32 %v1010, %v1017
        %v1023 = vadd.f32 %v1011, %v1019
        %v1024 = vrot.slane %v956, 7
        %v1025 = vrot.slane %v957, 7
        %v1026 = vsel %vm307, %v1024, %v1025
        %v1027 = vsel %vm307, %v1025, %v1024
        %1028 = vrot.lane.b32.xlu0 %v1027, 16
        %v1029 = vpop.permute.xlu0 %1028
        %v1030 = vsel %vm237, %v1029, %v1027
        %1031 = vrot.lane.b32.xlu0 %v1026, 16
        %v1032 = vpop.permute.xlu0 %1031
        %v1033 = vsel %vm237, %v1032, %v1026
        %1034 = vrot.lane.b32.xlu0 %v1030, 16
        %v1035 = vpop.permute.xlu0 %1034
        %1036 = vrot.lane.b32.xlu0 %v1033, 16
        %v1037 = vpop.permute.xlu0 %1036
        %v1038 = vsel %vm237, %v1035, %v1027
        %v1039 = vsel %vm237, %v1037, %v1026
        %v1040 = vmul.f32 %v322, %v1038
        %v1041 = vmul.f32 %v322, %v1039
        %v1042 = vadd.f32 %v1022, %v1040
        %v1043 = vadd.f32 %v1023, %v1041
        %v1044 = vmul.f32 %v327, %v1038
        %v1045 = vmul.f32 %v327, %v1039
        %1048 = vrot.lane.b32.xlu0 %v1044, 127
        %v1049 = vpop.permute.xlu0 %1048
        %1050 = vrot.lane.b32.xlu0 %v1045, 127
        %v1051 = vpop.permute.xlu0 %1050
        %v1054 = vadd.f32 %v1042, %v1049
        %v1055 = vadd.f32 %v1043, %v1051
        %v1056 = vmul.f32 %v340, %v1027
        %v1057 = vmul.f32 %v340, %v1026
        %1060 = vrot.lane.b32.xlu0 %v1056, 14
        %v1061 = vpop.permute.xlu0 %1060
        %1062 = vrot.lane.b32.xlu0 %v1057, 14
        %v1063 = vpop.permute.xlu0 %1062
        %v1066 = vadd.f32 %v1054, %v1061
        %v1067 = vadd.f32 %v1055, %v1063
        %v1068 = vmul.f32 %v353, %v1038
        %v1069 = vmul.f32 %v353, %v1039
        %1072 = vrot.lane.b32.xlu0 %v1068, 13
        %v1073 = vpop.permute.xlu0 %1072
        %1074 = vrot.lane.b32.xlu0 %v1069, 13
        %v1075 = vpop.permute.xlu0 %1074
        %v1078 = vadd.f32 %v1066, %v1073
        %v1079 = vadd.f32 %v1067, %v1075
        %v1080 = vmul.f32 %v366, %v1038
        %v1081 = vmul.f32 %v366, %v1039
        %1084 = vrot.lane.b32.xlu0 %v1080, 12
        %v1085 = vpop.permute.xlu0 %1084
        %1086 = vrot.lane.b32.xlu0 %v1081, 12
        %v1087 = vpop.permute.xlu0 %1086
        %v1090 = vadd.f32 %v1078, %v1085
        %v1091 = vadd.f32 %v1079, %v1087
        %1092 = vrot.lane.b32.xlu0 %v956, 16
        %v1093 = vpop.permute.xlu0 %1092
        %v1094 = vsel %vm237, %v1093, %v956
        %1095 = vrot.lane.b32.xlu0 %v957, 16
        %v1096 = vpop.permute.xlu0 %1095
        %v1097 = vsel %vm237, %v1096, %v957
        %1098 = vrot.lane.b32.xlu0 %v1094, 16
        %v1099 = vpop.permute.xlu0 %1098
        %1100 = vrot.lane.b32.xlu0 %v1097, 16
        %v1101 = vpop.permute.xlu0 %1100
        %v1102 = vsel %vm237, %v1099, %v956
        %v1103 = vsel %vm237, %v1101, %v957
        %v1104 = vmul.f32 %v391, %v1102
        %v1105 = vmul.f32 %v391, %v1103
        %v1106 = vadd.f32 %v1090, %v1104
        %v1107 = vadd.f32 %v1091, %v1105
        %v1108 = vmul.f32 %v396, %v1102
        %v1109 = vmul.f32 %v396, %v1103
        %1112 = vrot.lane.b32.xlu0 %v1108, 127
        %v1113 = vpop.permute.xlu0 %1112
        %1114 = vrot.lane.b32.xlu0 %v1109, 127
        %v1115 = vpop.permute.xlu0 %1114
        %v1118 = vadd.f32 %v1106, %v1113
        %v1119 = vadd.f32 %v1107, %v1115
        %v1120 = vmul.f32 %v409, %v956
        %v1121 = vmul.f32 %v409, %v957
        %1124 = vrot.lane.b32.xlu0 %v1120, 14
        %v1125 = vpop.permute.xlu0 %1124
        %1126 = vrot.lane.b32.xlu0 %v1121, 14
        %v1127 = vpop.permute.xlu0 %1126
        %v1130 = vadd.f32 %v1118, %v1125
        %v1131 = vadd.f32 %v1119, %v1127
        %v1132 = vmul.f32 %v422, %v1102
        %v1133 = vmul.f32 %v422, %v1103
        %1136 = vrot.lane.b32.xlu0 %v1132, 13
        %v1137 = vpop.permute.xlu0 %1136
        %1138 = vrot.lane.b32.xlu0 %v1133, 13
        %v1139 = vpop.permute.xlu0 %1138
        %v1142 = vadd.f32 %v1130, %v1137
        %v1143 = vadd.f32 %v1131, %v1139
        %v1144 = vmul.f32 %v435, %v1102
        %v1145 = vmul.f32 %v435, %v1103
        %1148 = vrot.lane.b32.xlu0 %v1144, 12
        %v1149 = vpop.permute.xlu0 %1148
        %1150 = vrot.lane.b32.xlu0 %v1145, 12
        %v1151 = vpop.permute.xlu0 %1150
        %v1154 = vadd.f32 %v1142, %v1149
        %v1155 = vadd.f32 %v1143, %v1151
        %v1156 = vrot.slane %v956, 1
        %v1157 = vrot.slane %v957, 1
        %v1158 = vsel %vm450, %v1156, %v1157
        %v1159 = vsel %vm450, %v1157, %v1156
        %1160 = vrot.lane.b32.xlu0 %v1158, 16
        %v1161 = vpop.permute.xlu0 %1160
        %v1162 = vsel %vm237, %v1161, %v1158
        %1163 = vrot.lane.b32.xlu0 %v1159, 16
        %v1164 = vpop.permute.xlu0 %1163
        %v1165 = vsel %vm237, %v1164, %v1159
        %1166 = vrot.lane.b32.xlu0 %v1162, 16
        %v1167 = vpop.permute.xlu0 %1166
        %1168 = vrot.lane.b32.xlu0 %v1165, 16
        %v1169 = vpop.permute.xlu0 %1168
        %v1170 = vsel %vm237, %v1167, %v1158
        %v1171 = vsel %vm237, %v1169, %v1159
        %v1172 = vmul.f32 %v465, %v1170
        %v1173 = vmul.f32 %v465, %v1171
        %v1174 = vadd.f32 %v1154, %v1172
        %v1175 = vadd.f32 %v1155, %v1173
        %v1176 = vmul.f32 %v470, %v1170
        %v1177 = vmul.f32 %v470, %v1171
        %1180 = vrot.lane.b32.xlu0 %v1176, 127
        %v1181 = vpop.permute.xlu0 %1180
        %1182 = vrot.lane.b32.xlu0 %v1177, 127
        %v1183 = vpop.permute.xlu0 %1182
        %v1186 = vadd.f32 %v1174, %v1181
        %v1187 = vadd.f32 %v1175, %v1183
        %v1188 = vmul.f32 %v483, %v1158
        %v1189 = vmul.f32 %v483, %v1159
        %1192 = vrot.lane.b32.xlu0 %v1188, 14
        %v1193 = vpop.permute.xlu0 %1192
        %1194 = vrot.lane.b32.xlu0 %v1189, 14
        %v1195 = vpop.permute.xlu0 %1194
        %v1198 = vadd.f32 %v1186, %v1193
        %v1199 = vadd.f32 %v1187, %v1195
        %v1200 = vmul.f32 %v496, %v1170
        %v1201 = vmul.f32 %v496, %v1171
        %1204 = vrot.lane.b32.xlu0 %v1200, 13
        %v1205 = vpop.permute.xlu0 %1204
        %1206 = vrot.lane.b32.xlu0 %v1201, 13
        %v1207 = vpop.permute.xlu0 %1206
        %v1210 = vadd.f32 %v1198, %v1205
        %v1211 = vadd.f32 %v1199, %v1207
        %v1212 = vmul.f32 %v509, %v1170
        %v1213 = vmul.f32 %v509, %v1171
        %1216 = vrot.lane.b32.xlu0 %v1212, 12
        %v1217 = vpop.permute.xlu0 %1216
        %1218 = vrot.lane.b32.xlu0 %v1213, 12
        %v1219 = vpop.permute.xlu0 %1218
        %v1222 = vadd.f32 %v1210, %v1217
        %v1223 = vadd.f32 %v1211, %v1219
        %v1224 = vrot.slane %v956, 2
        %v1225 = vrot.slane %v957, 2
        %v1226 = vsel %vm524, %v1224, %v1225
        %v1227 = vsel %vm524, %v1225, %v1224
        %1228 = vrot.lane.b32.xlu0 %v1226, 16
        %v1229 = vpop.permute.xlu0 %1228
        %v1230 = vsel %vm237, %v1229, %v1226
        %1231 = vrot.lane.b32.xlu0 %v1227, 16
        %v1232 = vpop.permute.xlu0 %1231
        %v1233 = vsel %vm237, %v1232, %v1227
        %1234 = vrot.lane.b32.xlu0 %v1230, 16
        %v1235 = vpop.permute.xlu0 %1234
        %1236 = vrot.lane.b32.xlu0 %v1233, 16
        %v1237 = vpop.permute.xlu0 %1236
        %v1238 = vsel %vm237, %v1235, %v1226
        %v1239 = vsel %vm237, %v1237, %v1227
        %v1240 = vmul.f32 %v539, %v1238
        %v1241 = vmul.f32 %v539, %v1239
        %v1242 = vadd.f32 %v1222, %v1240
        %v1243 = vadd.f32 %v1223, %v1241
        %v1244 = vmul.f32 %v544, %v1238
        %v1245 = vmul.f32 %v544, %v1239
        %1248 = vrot.lane.b32.xlu0 %v1244, 127
        %v1249 = vpop.permute.xlu0 %1248
        %1250 = vrot.lane.b32.xlu0 %v1245, 127
        %v1251 = vpop.permute.xlu0 %1250
        %v1254 = vadd.f32 %v1242, %v1249
        %v1255 = vadd.f32 %v1243, %v1251
        %v1256 = vmul.f32 %v557, %v1226
        %v1257 = vmul.f32 %v557, %v1227
        %1260 = vrot.lane.b32.xlu0 %v1256, 14
        %v1261 = vpop.permute.xlu0 %1260
        %1262 = vrot.lane.b32.xlu0 %v1257, 14
        %v1263 = vpop.permute.xlu0 %1262
        %v1266 = vadd.f32 %v1254, %v1261
        %v1267 = vadd.f32 %v1255, %v1263
        %v1268 = vmul.f32 %v570, %v1238
        %v1269 = vmul.f32 %v570, %v1239
        %1272 = vrot.lane.b32.xlu0 %v1268, 13
        %v1273 = vpop.permute.xlu0 %1272
        %1274 = vrot.lane.b32.xlu0 %v1269, 13
        %v1275 = vpop.permute.xlu0 %1274
        %v1278 = vadd.f32 %v1266, %v1273
        %v1279 = vadd.f32 %v1267, %v1275
        %v1280 = vmul.f32 %v583, %v1238
        %v1281 = vmul.f32 %v583, %v1239
        %1284 = vrot.lane.b32.xlu0 %v1280, 12
        %v1285 = vpop.permute.xlu0 %1284
        %1286 = vrot.lane.b32.xlu0 %v1281, 12
        %v1287 = vpop.permute.xlu0 %1286
        %v1290 = vadd.f32 %v1278, %v1285
        %v1291 = vadd.f32 %v1279, %v1287
        %1294 = vrot.lane.b32.xlu0 %v1290, 114
        %v1295 = vpop.permute.xlu0 %1294
        %1296 = vrot.lane.b32.xlu0 %v1291, 114
        %v1297 = vpop.permute.xlu0 %1296
        %s1300 = scalar_lea.vmem %s177, 32 [#allocation7]
        %1301 = vst.msk [vmem:[%s1300] sm:$0xff] %vm604, %v1295
        %1302 = vst.msk [vmem:[%s1300 + $0x8] sm:$0xff] %vm604, %v1297
        %s1303 = scalar_lea.vmem %s155, 48 [#allocation6]
        %v1304 = vld [vmem:[%s1303] sm:$0xff]
        %v1305 = vld [vmem:[%s1303 + $0x8] sm:$0xff]
        %v1306 = vrot.slane %v1304, 6
        %v1307 = vrot.slane %v1305, 6
        %v1308 = vsel %vm234, %v1306, %v1307
        %v1309 = vsel %vm234, %v1307, %v1306
        %1310 = vrot.lane.b32.xlu0 %v1309, 16
        %v1311 = vpop.permute.xlu0 %1310
        %v1312 = vsel %vm237, %v1311, %v1309
        %1313 = vrot.lane.b32.xlu0 %v1308, 16
        %v1314 = vpop.permute.xlu0 %1313
        %v1315 = vsel %vm237, %v1314, %v1308
        %1316 = vrot.lane.b32.xlu0 %v1312, 16
        %v1317 = vpop.permute.xlu0 %1316
        %1318 = vrot.lane.b32.xlu0 %v1315, 16
        %v1319 = vpop.permute.xlu0 %1318
        %v1320 = vsel %vm237, %v1317, %v1309
        %v1321 = vsel %vm237, %v1319, %v1308
        %v1322 = vmul.f32 %v250, %v1320
        %v1323 = vmul.f32 %v250, %v1321
        %v1324 = vmul.f32 %v253, %v1320
        %v1325 = vmul.f32 %v253, %v1321
        %1328 = vrot.lane.b32.xlu0 %v1324, 127
        %v1329 = vpop.permute.xlu0 %1328
        %1330 = vrot.lane.b32.xlu0 %v1325, 127
        %v1331 = vpop.permute.xlu0 %1330
        %v1334 = vadd.f32 %v1322, %v1329
        %v1335 = vadd.f32 %v1323, %v1331
        %v1336 = vmul.f32 %v266, %v1309
        %v1337 = vmul.f32 %v266, %v1308
        %1340 = vrot.lane.b32.xlu0 %v1336, 14
        %v1341 = vpop.permute.xlu0 %1340
        %1342 = vrot.lane.b32.xlu0 %v1337, 14
        %v1343 = vpop.permute.xlu0 %1342
        %v1346 = vadd.f32 %v1334, %v1341
        %v1347 = vadd.f32 %v1335, %v1343
        %v1348 = vmul.f32 %v279, %v1320
        %v1349 = vmul.f32 %v279, %v1321
        %1352 = vrot.lane.b32.xlu0 %v1348, 13
        %v1353 = vpop.permute.xlu0 %1352
        %1354 = vrot.lane.b32.xlu0 %v1349, 13
        %v1355 = vpop.permute.xlu0 %1354
        %v1358 = vadd.f32 %v1346, %v1353
        %v1359 = vadd.f32 %v1347, %v1355
        %v1360 = vmul.f32 %v292, %v1320
        %v1361 = vmul.f32 %v292, %v1321
        %1364 = vrot.lane.b32.xlu0 %v1360, 12
        %v1365 = vpop.permute.xlu0 %1364
        %1366 = vrot.lane.b32.xlu0 %v1361, 12
        %v1367 = vpop.permute.xlu0 %1366
        %v1370 = vadd.f32 %v1358, %v1365
        %v1371 = vadd.f32 %v1359, %v1367
        %v1372 = vrot.slane %v1304, 7
        %v1373 = vrot.slane %v1305, 7
        %v1374 = vsel %vm307, %v1372, %v1373
        %v1375 = vsel %vm307, %v1373, %v1372
        %1376 = vrot.lane.b32.xlu0 %v1375, 16
        %v1377 = vpop.permute.xlu0 %1376
        %v1378 = vsel %vm237, %v1377, %v1375
        %1379 = vrot.lane.b32.xlu0 %v1374, 16
        %v1380 = vpop.permute.xlu0 %1379
        %v1381 = vsel %vm237, %v1380, %v1374
        %1382 = vrot.lane.b32.xlu0 %v1378, 16
        %v1383 = vpop.permute.xlu0 %1382
        %1384 = vrot.lane.b32.xlu0 %v1381, 16
        %v1385 = vpop.permute.xlu0 %1384
        %v1386 = vsel %vm237, %v1383, %v1375
        %v1387 = vsel %vm237, %v1385, %v1374
        %v1388 = vmul.f32 %v322, %v1386
        %v1389 = vmul.f32 %v322, %v1387
        %v1390 = vadd.f32 %v1370, %v1388
        %v1391 = vadd.f32 %v1371, %v1389
        %v1392 = vmul.f32 %v327, %v1386
        %v1393 = vmul.f32 %v327, %v1387
        %1396 = vrot.lane.b32.xlu0 %v1392, 127
        %v1397 = vpop.permute.xlu0 %1396
        %1398 = vrot.lane.b32.xlu0 %v1393, 127
        %v1399 = vpop.permute.xlu0 %1398
        %v1402 = vadd.f32 %v1390, %v1397
        %v1403 = vadd.f32 %v1391, %v1399
        %v1404 = vmul.f32 %v340, %v1375
        %v1405 = vmul.f32 %v340, %v1374
        %1408 = vrot.lane.b32.xlu0 %v1404, 14
        %v1409 = vpop.permute.xlu0 %1408
        %1410 = vrot.lane.b32.xlu0 %v1405, 14
        %v1411 = vpop.permute.xlu0 %1410
        %v1414 = vadd.f32 %v1402, %v1409
        %v1415 = vadd.f32 %v1403, %v1411
        %v1416 = vmul.f32 %v353, %v1386
        %v1417 = vmul.f32 %v353, %v1387
        %1420 = vrot.lane.b32.xlu0 %v1416, 13
        %v1421 = vpop.permute.xlu0 %1420
        %1422 = vrot.lane.b32.xlu0 %v1417, 13
        %v1423 = vpop.permute.xlu0 %1422
        %v1426 = vadd.f32 %v1414, %v1421
        %v1427 = vadd.f32 %v1415, %v1423
        %v1428 = vmul.f32 %v366, %v1386
        %v1429 = vmul.f32 %v366, %v1387
        %1432 = vrot.lane.b32.xlu0 %v1428, 12
        %v1433 = vpop.permute.xlu0 %1432
        %1434 = vrot.lane.b32.xlu0 %v1429, 12
        %v1435 = vpop.permute.xlu0 %1434
        %v1438 = vadd.f32 %v1426, %v1433
        %v1439 = vadd.f32 %v1427, %v1435
        %1440 = vrot.lane.b32.xlu0 %v1304, 16
        %v1441 = vpop.permute.xlu0 %1440
        %v1442 = vsel %vm237, %v1441, %v1304
        %1443 = vrot.lane.b32.xlu0 %v1305, 16
        %v1444 = vpop.permute.xlu0 %1443
        %v1445 = vsel %vm237, %v1444, %v1305
        %1446 = vrot.lane.b32.xlu0 %v1442, 16
        %v1447 = vpop.permute.xlu0 %1446
        %1448 = vrot.lane.b32.xlu0 %v1445, 16
        %v1449 = vpop.permute.xlu0 %1448
        %v1450 = vsel %vm237, %v1447, %v1304
        %v1451 = vsel %vm237, %v1449, %v1305
        %v1452 = vmul.f32 %v391, %v1450
        %v1453 = vmul.f32 %v391, %v1451
        %v1454 = vadd.f32 %v1438, %v1452
        %v1455 = vadd.f32 %v1439, %v1453
        %v1456 = vmul.f32 %v396, %v1450
        %v1457 = vmul.f32 %v396, %v1451
        %1460 = vrot.lane.b32.xlu0 %v1456, 127
        %v1461 = vpop.permute.xlu0 %1460
        %1462 = vrot.lane.b32.xlu0 %v1457, 127
        %v1463 = vpop.permute.xlu0 %1462
        %v1466 = vadd.f32 %v1454, %v1461
        %v1467 = vadd.f32 %v1455, %v1463
        %v1468 = vmul.f32 %v409, %v1304
        %v1469 = vmul.f32 %v409, %v1305
        %1472 = vrot.lane.b32.xlu0 %v1468, 14
        %v1473 = vpop.permute.xlu0 %1472
        %1474 = vrot.lane.b32.xlu0 %v1469, 14
        %v1475 = vpop.permute.xlu0 %1474
        %v1478 = vadd.f32 %v1466, %v1473
        %v1479 = vadd.f32 %v1467, %v1475
        %v1480 = vmul.f32 %v422, %v1450
        %v1481 = vmul.f32 %v422, %v1451
        %1484 = vrot.lane.b32.xlu0 %v1480, 13
        %v1485 = vpop.permute.xlu0 %1484
        %1486 = vrot.lane.b32.xlu0 %v1481, 13
        %v1487 = vpop.permute.xlu0 %1486
        %v1490 = vadd.f32 %v1478, %v1485
        %v1491 = vadd.f32 %v1479, %v1487
        %v1492 = vmul.f32 %v435, %v1450
        %v1493 = vmul.f32 %v435, %v1451
        %1496 = vrot.lane.b32.xlu0 %v1492, 12
        %v1497 = vpop.permute.xlu0 %1496
        %1498 = vrot.lane.b32.xlu0 %v1493, 12
        %v1499 = vpop.permute.xlu0 %1498
        %v1502 = vadd.f32 %v1490, %v1497
        %v1503 = vadd.f32 %v1491, %v1499
        %v1504 = vrot.slane %v1304, 1
        %v1505 = vrot.slane %v1305, 1
        %v1506 = vsel %vm450, %v1504, %v1505
        %v1507 = vsel %vm450, %v1505, %v1504
        %1508 = vrot.lane.b32.xlu0 %v1506, 16
        %v1509 = vpop.permute.xlu0 %1508
        %v1510 = vsel %vm237, %v1509, %v1506
        %1511 = vrot.lane.b32.xlu0 %v1507, 16
        %v1512 = vpop.permute.xlu0 %1511
        %v1513 = vsel %vm237, %v1512, %v1507
        %1514 = vrot.lane.b32.xlu0 %v1510, 16
        %v1515 = vpop.permute.xlu0 %1514
        %1516 = vrot.lane.b32.xlu0 %v1513, 16
        %v1517 = vpop.permute.xlu0 %1516
        %v1518 = vsel %vm237, %v1515, %v1506
        %v1519 = vsel %vm237, %v1517, %v1507
        %v1520 = vmul.f32 %v465, %v1518
        %v1521 = vmul.f32 %v465, %v1519
        %v1522 = vadd.f32 %v1502, %v1520
        %v1523 = vadd.f32 %v1503, %v1521
        %v1524 = vmul.f32 %v470, %v1518
        %v1525 = vmul.f32 %v470, %v1519
        %1528 = vrot.lane.b32.xlu0 %v1524, 127
        %v1529 = vpop.permute.xlu0 %1528
        %1530 = vrot.lane.b32.xlu0 %v1525, 127
        %v1531 = vpop.permute.xlu0 %1530
        %v1534 = vadd.f32 %v1522, %v1529
        %v1535 = vadd.f32 %v1523, %v1531
        %v1536 = vmul.f32 %v483, %v1506
        %v1537 = vmul.f32 %v483, %v1507
        %1540 = vrot.lane.b32.xlu0 %v1536, 14
        %v1541 = vpop.permute.xlu0 %1540
        %1542 = vrot.lane.b32.xlu0 %v1537, 14
        %v1543 = vpop.permute.xlu0 %1542
        %v1546 = vadd.f32 %v1534, %v1541
        %v1547 = vadd.f32 %v1535, %v1543
        %v1548 = vmul.f32 %v496, %v1518
        %v1549 = vmul.f32 %v496, %v1519
        %1552 = vrot.lane.b32.xlu0 %v1548, 13
        %v1553 = vpop.permute.xlu0 %1552
        %1554 = vrot.lane.b32.xlu0 %v1549, 13
        %v1555 = vpop.permute.xlu0 %1554
        %v1558 = vadd.f32 %v1546, %v1553
        %v1559 = vadd.f32 %v1547, %v1555
        %v1560 = vmul.f32 %v509, %v1518
        %v1561 = vmul.f32 %v509, %v1519
        %1564 = vrot.lane.b32.xlu0 %v1560, 12
        %v1565 = vpop.permute.xlu0 %1564
        %1566 = vrot.lane.b32.xlu0 %v1561, 12
        %v1567 = vpop.permute.xlu0 %1566
        %v1570 = vadd.f32 %v1558, %v1565
        %v1571 = vadd.f32 %v1559, %v1567
        %v1572 = vrot.slane %v1304, 2
        %v1573 = vrot.slane %v1305, 2
        %v1574 = vsel %vm524, %v1572, %v1573
        %v1575 = vsel %vm524, %v1573, %v1572
        %1576 = vrot.lane.b32.xlu0 %v1574, 16
        %v1577 = vpop.permute.xlu0 %1576
        %v1578 = vsel %vm237, %v1577, %v1574
        %1579 = vrot.lane.b32.xlu0 %v1575, 16
        %v1580 = vpop.permute.xlu0 %1579
        %v1581 = vsel %vm237, %v1580, %v1575
        %1582 = vrot.lane.b32.xlu0 %v1578, 16
        %v1583 = vpop.permute.xlu0 %1582
        %1584 = vrot.lane.b32.xlu0 %v1581, 16
        %v1585 = vpop.permute.xlu0 %1584
        %v1586 = vsel %vm237, %v1583, %v1574
        %v1587 = vsel %vm237, %v1585, %v1575
        %v1588 = vmul.f32 %v539, %v1586
        %v1589 = vmul.f32 %v539, %v1587
        %v1590 = vadd.f32 %v1570, %v1588
        %v1591 = vadd.f32 %v1571, %v1589
        %v1592 = vmul.f32 %v544, %v1586
        %v1593 = vmul.f32 %v544, %v1587
        %1596 = vrot.lane.b32.xlu0 %v1592, 127
        %v1597 = vpop.permute.xlu0 %1596
        %1598 = vrot.lane.b32.xlu0 %v1593, 127
        %v1599 = vpop.permute.xlu0 %1598
        %v1602 = vadd.f32 %v1590, %v1597
        %v1603 = vadd.f32 %v1591, %v1599
        %v1604 = vmul.f32 %v557, %v1574
        %v1605 = vmul.f32 %v557, %v1575
        %1608 = vrot.lane.b32.xlu0 %v1604, 14
        %v1609 = vpop.permute.xlu0 %1608
        %1610 = vrot.lane.b32.xlu0 %v1605, 14
        %v1611 = vpop.permute.xlu0 %1610
        %v1614 = vadd.f32 %v1602, %v1609
        %v1615 = vadd.f32 %v1603, %v1611
        %v1616 = vmul.f32 %v570, %v1586
        %v1617 = vmul.f32 %v570, %v1587
        %1620 = vrot.lane.b32.xlu0 %v1616, 13
        %v1621 = vpop.permute.xlu0 %1620
        %1622 = vrot.lane.b32.xlu0 %v1617, 13
        %v1623 = vpop.permute.xlu0 %1622
        %v1626 = vadd.f32 %v1614, %v1621
        %v1627 = vadd.f32 %v1615, %v1623
        %v1628 = vmul.f32 %v583, %v1586
        %v1629 = vmul.f32 %v583, %v1587
        %1632 = vrot.lane.b32.xlu0 %v1628, 12
        %v1633 = vpop.permute.xlu0 %1632
        %1634 = vrot.lane.b32.xlu0 %v1629, 12
        %v1635 = vpop.permute.xlu0 %1634
        %v1638 = vadd.f32 %v1626, %v1633
        %v1639 = vadd.f32 %v1627, %v1635
        %1642 = vrot.lane.b32.xlu0 %v1638, 114
        %v1643 = vpop.permute.xlu0 %1642
        %1644 = vrot.lane.b32.xlu0 %v1639, 114
        %v1645 = vpop.permute.xlu0 %1644
        %s1648 = scalar_lea.vmem %s177, 48 [#allocation7]
        %1649 = vst.msk [vmem:[%s1648] sm:$0xff] %vm604, %v1643
        %1650 = vst.msk [vmem:[%s1648 + $0x8] sm:$0xff] %vm604, %v1645
        %s1651 = sand.u32 %s75, 1
        %s1652 = scalar_lea.sflag [#allocation4], %s1651
        %s1653 = sand.u32 %s75, 1
        %s1654 = smul.addr %s1653, 64
        %s1655 = scalar_lea.vmem [#allocation7], %s1654
        // Predicated region
        $region37: #{tpu_custom_call.1} parent=27 // pred_check
          %p1656 = pneg %p85
        $region38: #{tpu_custom_call.1} parent=27 // pred_check_branch
          %1658 = sbr.rel (%p1656) target = $region40
        $region39: #{tpu_custom_call.1} parent=27 // pred_region
          %1660 = vsyncadd %s1652, 0
          %s1661 = smul.addr %s20, 8
          %s1662 = smul.addr %s1661, 8
          %s1663 = scalar_lea.hbm %s2, %s1662
          %s1664 = sshll.u32 %s1655, 4
          %s1665 = int_to_ptr.vmem [resolvable:$true] %s1664
          %s1666 = sshll.u32 %s1663, 4
          %s1667 = int_to_ptr.hbm [resolvable:$true] %s1666
          %1672 = dma.vmem_to_hbm [thread:$0]  %s1665, 1024, %s1667, %s1652, 128, 128, 8
        $region40: #{tpu_custom_call.1} parent=27 // pred_fallthru
          _
      $region28: #{tpu_custom_call.1} parent=5 // pred_fallthru
        _
      %p1673 = scmp.le.s32.totalorder 2, %s15
      // Predicated region
      $region41: #{tpu_custom_call.1} parent=5 // pred_check
        %p1674 = pneg %p1673
      $region42: #{tpu_custom_call.1} parent=5 // pred_check_branch
        %1676 = sbr.rel (%p1674) target = $region44
      $region43: #{tpu_custom_call.1} parent=5 // pred_region
        %s1677 = ssub.s32 %s15, 2
        // Predicated region
        $region45: #{tpu_custom_call.1} parent=43 // pred_check
          %p1678 = pneg %p91
        $region46: #{tpu_custom_call.1} parent=43 // pred_check_branch
          %1680 = sbr.rel (%p1678) target = $region48
        $region47: #{tpu_custom_call.1} parent=43 // pred_region
          %s1681 = sand.u32 %s76, 1
          %s1682 = scalar_lea.sflag [#allocation4], %s1681
          %s1683 = sand.u32 %s76, 1
          %s1684 = smul.addr %s1683, 64
          %s1685 = scalar_lea.vmem [#allocation7], %s1684
          %1687 = dma.done %s1682, 1024
        $region48: #{tpu_custom_call.1} parent=43 // pred_fallthru
          _
      $region44: #{tpu_custom_call.1} parent=5 // pred_fallthru
        _
    $region6: #{tpu_custom_call.1} parent=1 // loop_footer
      %s19 = sadd.s32 1, %s15
    $region7: #{tpu_custom_call.1} parent=1 // loop_footer_branch
      %14 = sbr.rel target = $region3
    $region8: #{tpu_custom_call.1} parent=1 // loop_exit
      _
    %1688 = vsyncpa [#allocation3], 1
    %s1689 = scalar_lea.sflag [#allocation3], 1
    %1690 = vsyncpa %s1689, 1
    %1691 = vsyncpa [#allocation4], 1
    %s1692 = scalar_lea.sflag [#allocation4], 1
    %1693 = vsyncpa %s1692, 1
    %1694 = vsyncpa [#allocation5], 1
    %s1695 = scalar_lea.sflag [#allocation5], 1
    %1696 = vsyncpa %s1695, 1

</llo_original>
